<compile_context>
chip_gen: v5e
topology: v5e:2x2
jax: 0.10.0
libtpu: 0.0.40
codegen_flags: <defaults>
</compile_context>

<pallas_src>
import functools

import jax
import jax.numpy as jnp
from jax.experimental import pallas as pl
from jax.experimental.pallas import tpu as pltpu


def _round_up(a: int, m: int) -> int:
    return (a + m - 1) // m * m


def fused_factorized_kernel(x_ref, w_ref, b_ref, o_ref):
    # x_ref: (TB, K_pad)   batch tile, pixels*frames flattened on lanes
    # w_ref: (K_pad, N_pad) fused conv1*conv2 weight
    # b_ref: (1, N_pad)     fused bias  (b1 * sum_c w2[:, c] + b2)
    # o_ref: (TB, N_pad)
    z = jnp.dot(
        x_ref[...],
        w_ref[...],
        preferred_element_type=jnp.float32,
        precision=jax.lax.Precision.HIGHEST,
    )
    z = z + b_ref[...]
    # F.softplus(beta=1, threshold=20)
    sp = jnp.log1p(jnp.exp(jnp.minimum(z, 20.0)))
    o_ref[...] = jnp.where(z > 20.0, z, sp).astype(o_ref.dtype)


@functools.partial(jax.jit, static_argnames=("tb_max",))
def factorized_forward(x, w1, b1, w2, b2, *, tb_max: int = 512):
    """x: (B,1,C,H,W); w1: (1,1,1,H,W); b1: (1,); w2: (N,1,C,1,1); b2: (N,)."""
    B, _, C, H, W = x.shape
    N = w2.shape[0]
    HW = H * W
    K = C * HW

    # --- Fuse conv1 + conv2 into a single GEMM (done once, in the wrapper) ---
    w1_flat = w1.reshape(HW).astype(jnp.float32)                   # (HW,)
    w2_mat = w2.reshape(N, C).astype(jnp.float32)                  # (N, C)
    # W_big[c*HW + p, n] = w1[p] * w2[n, c]
    w_big = (w2_mat.T[:, None, :] * w1_flat[None, :, None]).reshape(K, N)
    bias = b1.reshape(()).astype(jnp.float32) * jnp.sum(w2_mat, axis=1)
    bias = bias + b2.astype(jnp.float32)                           # (N,)

    # --- Padding for dense lanes / aligned sublanes ---
    K_pad = _round_up(K, 128)
    N_pad = _round_up(max(N, 128), 128)       # lane-dense output (>= 128 lanes)
    TB = min(tb_max, _round_up(B, 8))         # batch tile (multiple of 8 sublanes)
    B_pad = _round_up(B, TB)

    # NOTE: for large-B / bandwidth-bound deployments, cast x2d/w_big to bfloat16
    # here (MXU accumulates into f32); kept f32 to preserve 1e-5-level accuracy.
    x2d = x.reshape(B, K).astype(jnp.float32)
    x2d = jnp.pad(x2d, ((0, B_pad - B), (0, K_pad - K)))
    w_big = jnp.pad(w_big, ((0, K_pad - K), (0, N_pad - N)))
    bias = jnp.pad(bias, (0, N_pad - N)).reshape(1, N_pad)

    grid = (B_pad // TB,)
    out = pl.pallas_call(
        fused_factorized_kernel,
        out_shape=jax.ShapeDtypeStruct((B_pad, N_pad), jnp.float32),
        grid=grid,
        in_specs=[
            pl.BlockSpec((TB, K_pad), lambda i: (i, 0)),      # batch-tiled activations
            pl.BlockSpec((K_pad, N_pad), lambda i: (0, 0)),   # fused weights (resident)
            pl.BlockSpec((1, N_pad), lambda i: (0, 0)),       # fused bias (resident)
        ],
        out_specs=pl.BlockSpec((TB, N_pad), lambda i: (i, 0)),
        compiler_params=pltpu.CompilerParams(
            dimension_semantics=("parallel",),                # megacore-shardable batch axis
        ),
        cost_estimate=pl.CostEstimate(
            flops=2 * B_pad * K_pad * N_pad,
            transcendentals=B_pad * N_pad,
            bytes_accessed=4 * (B_pad * K_pad + K_pad * N_pad + B_pad * N_pad),
        ),
    )(x2d, w_big, bias)

    # Drop padding; torch.squeeze(x,1) is a no-op for N>1, .squeeze(-1) leaves (B,N,1,1).
    return out[:B, :N].reshape(B, N, 1, 1)


if __name__ == "__main__":
    # Small shapes consistent with the module:
    # input_shape = (H, W) = (16, 16), num_of_channels C = 4, num_of_neurons N = 8, B = 2.
    B, C, H, W, N = 2, 4, 16, 16, 8

    key = jax.random.PRNGKey(0)
    kx, kw1, kb1, kw2, kb2 = jax.random.split(key, 5)

    x = jax.random.normal(kx, (B, 1, C, H, W), dtype=jnp.float32)
    # Deterministic parameter init (shapes follow nn.Conv3d in __init__).
    w1 = 0.005 * jax.random.normal(kw1, (1, 1, 1, H, W), dtype=jnp.float32)  # conv1.weight
    b1 = 0.01 * jax.random.normal(kb1, (1,), dtype=jnp.float32)              # conv1.bias
    w2 = 0.1 * jax.random.normal(kw2, (N, 1, C, 1, 1), dtype=jnp.float32)    # conv2.weight
    b2 = 0.01 * jax.random.normal(kb2, (N,), dtype=jnp.float32)              # conv2.bias

    out = factorized_forward(x, w1, b1, w2, b2)
    out = jax.block_until_ready(out)

    # Pure-JAX reference (two-step, matching the PyTorch module exactly).
    y_ref = jnp.einsum("bchw,hw->bc", x[:, 0], w1[0, 0, 0]) + b1[0]
    z_ref = y_ref @ w2.reshape(N, C).T + b2
    expected = jax.nn.softplus(z_ref).reshape(B, N, 1, 1)

    assert out.shape == (B, N, 1, 1)
    assert jnp.allclose(out, expected, atol=2e-5, rtol=1e-4), (
        float(jnp.max(jnp.abs(out - expected)))
    )
    print("KERNEL_OK")
</pallas_src>

<mosaic_0001>
module attributes {stable_mosaic.version = 11 : i64} {
  func.func @fused_factorized_kernel(%arg0: i32, %arg1: memref<8x1024xf32, #tpu.memory_space<vmem>>, %arg2: memref<1024x128xf32, #tpu.memory_space<vmem>>, %arg3: memref<1x128xf32, #tpu.memory_space<vmem>>, %arg4: memref<8x128xf32, #tpu.memory_space<vmem>>) attributes {dimension_semantics = [#tpu.dimension_semantics<parallel>], iteration_bounds = array<i64: 1>, scalar_prefetch = 0 : i64, scratch_operands = 0 : i64, tpu.core_type = #tpu.core_type<tc>, window_params = [{transform_indices = @transform_0, window_bounds = array<i64: 8, 1024>}, {pipeline_mode = #tpu.pipeline_mode<synchronous>, transform_indices = @transform_1, window_bounds = array<i64: 1024, 128>}, {pipeline_mode = #tpu.pipeline_mode<synchronous>, transform_indices = @transform_2, window_bounds = array<i64: 1, 128>}, {transform_indices = @transform_3, window_bounds = array<i64: 8, 128>}]} {
    %c0 = arith.constant 0 : index
    %c0_0 = arith.constant 0 : index
    %0 = vector.load %arg1[%c0, %c0_0] : memref<8x1024xf32, #tpu.memory_space<vmem>>, vector<8x1024xf32>
    %c0_1 = arith.constant 0 : index
    %c0_2 = arith.constant 0 : index
    %1 = vector.load %arg2[%c0_1, %c0_2] : memref<1024x128xf32, #tpu.memory_space<vmem>>, vector<1024x128xf32>
    %cst = arith.constant dense<0.000000e+00> : vector<8x128xf32>
    %2 = tpu.matmul %0, %1, %cst {dimension_numbers = #tpu.dot_dimension_numbers<[1], [0], [0], [1], [0, 0, 1, 1], [], []>, precision = #tpu.contract_precision<fp32>} : vector<8x1024xf32>, vector<1024x128xf32>, vector<8x128xf32> -> vector<8x128xf32>
    %c0_3 = arith.constant 0 : index
    %c0_4 = arith.constant 0 : index
    %3 = vector.load %arg3[%c0_3, %c0_4] : memref<1x128xf32, #tpu.memory_space<vmem>>, vector<1x128xf32>
    %4 = vector.broadcast %3 : vector<1x128xf32> to vector<8x128xf32>
    %5 = arith.addf %2, %4 : vector<8x128xf32>
    %cst_5 = arith.constant 2.000000e+01 : f32
    %6 = vector.broadcast %cst_5 : f32 to vector<8x128xf32>
    %7 = arith.minimumf %5, %6 : vector<8x128xf32>
    %8 = math.exp %7 : vector<8x128xf32>
    %9 = math.log1p %8 : vector<8x128xf32>
    %cst_6 = arith.constant 2.000000e+01 : f32
    %10 = vector.broadcast %cst_6 : f32 to vector<8x128xf32>
    %11 = arith.cmpf ogt, %5, %10 : vector<8x128xf32>
    %12 = arith.select %11, %5, %9 : vector<8x128xi1>, vector<8x128xf32>
    %c0_7 = arith.constant 0 : index
    %c0_8 = arith.constant 0 : index
    %13 = vector.load %arg4[%c0_7, %c0_8] : memref<8x128xf32, #tpu.memory_space<vmem>>, vector<8x128xf32>
    tpu.vector_store %arg4[%c0_7, %c0_8], %12 {strides = array<i32>} : memref<8x128xf32, #tpu.memory_space<vmem>>, vector<8x128xf32>,
    return
  }
  func.func @transform_0(%arg0: i32) -> (i32, i32) {
    %c0_i32 = arith.constant 0 : i32
    %c0_i32_0 = arith.constant 0 : i32
    return %arg0, %c0_i32 : i32, i32
  }
  func.func @transform_1(%arg0: i32) -> (i32, i32) {
    %c0_i32 = arith.constant 0 : i32
    %c0_i32_0 = arith.constant 0 : i32
    %c0_i32_1 = arith.constant 0 : i32
    return %c0_i32, %c0_i32_0 : i32, i32
  }
  func.func @transform_2(%arg0: i32) -> (i32, i32) {
    %c0_i32 = arith.constant 0 : i32
    %c0_i32_0 = arith.constant 0 : i32
    %c0_i32_1 = arith.constant 0 : i32
    return %c0_i32, %c0_i32_0 : i32, i32
  }
  func.func @transform_3(%arg0: i32) -> (i32, i32) {
    %c0_i32 = arith.constant 0 : i32
    %c0_i32_0 = arith.constant 0 : i32
    return %arg0, %c0_i32 : i32, i32
  }
}

</mosaic_0001>

<llo_original>
// kernel: mul.13
$region0: #{mul.13}
  %s0 = inlined_call_operand.vmem [shape: f32[1,1,1,16,16], index: 0, kind: input, shape index: {}]
  %s1 = inlined_call_operand.vmem [shape: f32[256], index: 1, kind: output, shape index: {}]
  $region1: #{mul.13} parent=0
    #allocation0 [shape = 'u8[4096]{0}', space=vmem, size = 0x1000, scoped, tag = 'scoped mem for output reshape']
    %s2 = smov 3
    %v3 = vld [vmem:[%s0] ss:$8 sm:%s2]
    %vm4 = vcmask 130048
    %5 = vst.msk [vmem:[#allocation0] sm:$0x3] %vm4, %v3
    %s6 = scalar_lea.vmem %s0, 7
    %s7 = smov 3
    %v8 = vld [vmem:[%s6] ss:$8 sm:%s7]
    %9 = vrot.lane.b32.xlu0 %v8, 112
    %v10 = vpop.permute.xlu0 %9
    %vm11 = vcmask 1048448
    %12 = vst.msk [vmem:[#allocation0] sm:$0x3] %vm11, %v10
    %s13 = scalar_lea.vmem %s0, 6
    %s14 = smov 3
    %v15 = vld [vmem:[%s13] ss:$8 sm:%s14]
    %16 = vrot.lane.b32.xlu0 %v15, 96
    %v17 = vpop.permute.xlu0 %16
    %vm18 = vcmask 917248
    %19 = vst.msk [vmem:[#allocation0] sm:$0x3] %vm18, %v17
    %s20 = scalar_lea.vmem %s0, 5
    %s21 = smov 3
    %v22 = vld [vmem:[%s20] ss:$8 sm:%s21]
    %23 = vrot.lane.b32.xlu0 %v22, 80
    %v24 = vpop.permute.xlu0 %23
    %vm25 = vcmask 786048
    %26 = vst.msk [vmem:[#allocation0] sm:$0x3] %vm25, %v24
    %s27 = scalar_lea.vmem %s0, 4
    %s28 = smov 3
    %v29 = vld [vmem:[%s27] ss:$8 sm:%s28]
    %30 = vrot.lane.b32.xlu0 %v29, 64
    %v31 = vpop.permute.xlu0 %30
    %vm32 = vcmask 654848
    %33 = vst.msk [vmem:[#allocation0] sm:$0x3] %vm32, %v31
    %s34 = scalar_lea.vmem %s0, 3
    %s35 = smov 3
    %v36 = vld [vmem:[%s34] ss:$8 sm:%s35]
    %37 = vrot.lane.b32.xlu0 %v36, 48
    %v38 = vpop.permute.xlu0 %37
    %vm39 = vcmask 523648
    %40 = vst.msk [vmem:[#allocation0] sm:$0x3] %vm39, %v38
    %s41 = scalar_lea.vmem %s0, 2
    %s42 = smov 3
    %v43 = vld [vmem:[%s41] ss:$8 sm:%s42]
    %44 = vrot.lane.b32.xlu0 %v43, 32
    %v45 = vpop.permute.xlu0 %44
    %vm46 = vcmask 392448
    %47 = vst.msk [vmem:[#allocation0] sm:$0x3] %vm46, %v45
    %s48 = scalar_lea.vmem %s0, 1
    %s49 = smov 3
    %v50 = vld [vmem:[%s48] ss:$8 sm:%s49]
    %51 = vrot.lane.b32.xlu0 %v50, 16
    %v52 = vpop.permute.xlu0 %51
    %vm53 = vcmask 261248
    %54 = vst.msk [vmem:[#allocation0] sm:$0x3] %vm53, %v52
    %s56 = ssub.s32 4, 1
    %v57 = vld [vmem:[#allocation0] sm:%s56]
    %s59 = ssub.s32 4, 1
    %60 = vst [vmem:[%s1] sm:%s59] %v57

// kernel: factorized_forward.1
$region0: #{factorized_forward.1}
  #allocation0 [shape = 'u32[]', space=smem, size = 0x4, offset = 0x4, fixed_abs, tag = 'smem constant byte address 0x4 - core index']
  #allocation1 [shape = 'u32[72,128]{1,0:T(1,128)}', space=vmem, size = 0x9000, scoped, tag = 'internal scratch']
  %s0 = inlined_call_operand.vmem [shape: f32[8,1024], index: 0, kind: input, shape index: {}]
  %s1 = inlined_call_operand.vmem [shape: f32[1024,128], index: 1, kind: input, shape index: {}]
  %s2 = inlined_call_operand.vmem [shape: f32[1,128], index: 2, kind: input, shape index: {}]
  %s3 = inlined_call_operand.vmem [shape: f32[8,128], index: 3, kind: output, shape index: {}]
  %s4 = sld [smem:[#allocation0]]
  $region22: #{factorized_forward.1} parent=0
    _
  %s6 = ssub.s32 1, %s4
  %s7 = scalar_select 0, %s6, %s4
  // Predicated region
  $region2: #{factorized_forward.1} parent=0 // pred_check
    _
  $region3: #{factorized_forward.1} parent=0 // pred_check_branch
    %9 = sbr.rel (0) target = $region5
  $region4: #{factorized_forward.1} parent=0 // pred_region
    _
  $region5: #{factorized_forward.1} parent=0 // pred_fallthru
    _
  // Predicated region
  $region6: #{factorized_forward.1} parent=0 // pred_check
    _
  $region7: #{factorized_forward.1} parent=0 // pred_check_branch
    %11 = sbr.rel (0) target = $region9
  $region8: #{factorized_forward.1} parent=0 // pred_region
    _
  $region9: #{factorized_forward.1} parent=0 // pred_fallthru
    _
  // Predicated region
  $region10: #{factorized_forward.1} parent=0 // pred_check
    _
  $region11: #{factorized_forward.1} parent=0 // pred_check_branch
    %13 = sbr.rel (0) target = $region13
  $region12: #{factorized_forward.1} parent=0 // pred_region
    _
  $region13: #{factorized_forward.1} parent=0 // pred_fallthru
    _
  %v14 = vld [vmem:[%s0] sm:$0xff]
  %v15 = vld [vmem:[%s0 + $0x8] sm:$0xff]
  %v16 = vld [vmem:[%s0 + $0x10] sm:$0xff]
  %v17 = vld [vmem:[%s0 + $0x18] sm:$0xff]
  %v18 = vld [vmem:[%s0 + $0x20] sm:$0xff]
  %v19 = vld [vmem:[%s0 + $0x28] sm:$0xff]
  %v20 = vld [vmem:[%s0 + $0x30] sm:$0xff]
  %v21 = vld [vmem:[%s0 + $0x38] sm:$0xff]
  %v22 = vld [vmem:[%s1] sm:$0xff]
  %v23 = vld [vmem:[%s1 + $0x8] sm:$0xff]
  %v24 = vld [vmem:[%s1 + $0x10] sm:$0xff]
  %v25 = vld [vmem:[%s1 + $0x18] sm:$0xff]
  %v26 = vld [vmem:[%s1 + $0x20] sm:$0xff]
  %v27 = vld [vmem:[%s1 + $0x28] sm:$0xff]
  %v28 = vld [vmem:[%s1 + $0x30] sm:$0xff]
  %v29 = vld [vmem:[%s1 + $0x38] sm:$0xff]
  %v30 = vld [vmem:[%s1 + $0x40] sm:$0xff]
  %v31 = vld [vmem:[%s1 + $0x48] sm:$0xff]
  %v32 = vld [vmem:[%s1 + $0x50] sm:$0xff]
  %v33 = vld [vmem:[%s1 + $0x58] sm:$0xff]
  %v34 = vld [vmem:[%s1 + $0x60] sm:$0xff]
  %v35 = vld [vmem:[%s1 + $0x68] sm:$0xff]
  %v36 = vld [vmem:[%s1 + $0x70] sm:$0xff]
  %v37 = vld [vmem:[%s1 + $0x78] sm:$0xff]
  %v38 = vld [vmem:[%s1 + $0x80] sm:$0xff]
  %v39 = vld [vmem:[%s1 + $0x88] sm:$0xff]
  %v40 = vld [vmem:[%s1 + $0x90] sm:$0xff]
  %v41 = vld [vmem:[%s1 + $0x98] sm:$0xff]
  %v42 = vld [vmem:[%s1 + $0xa0] sm:$0xff]
  %v43 = vld [vmem:[%s1 + $0xa8] sm:$0xff]
  %v44 = vld [vmem:[%s1 + $0xb0] sm:$0xff]
  %v45 = vld [vmem:[%s1 + $0xb8] sm:$0xff]
  %v46 = vld [vmem:[%s1 + $0xc0] sm:$0xff]
  %v47 = vld [vmem:[%s1 + $0xc8] sm:$0xff]
  %v48 = vld [vmem:[%s1 + $0xd0] sm:$0xff]
  %v49 = vld [vmem:[%s1 + $0xd8] sm:$0xff]
  %v50 = vld [vmem:[%s1 + $0xe0] sm:$0xff]
  %v51 = vld [vmem:[%s1 + $0xe8] sm:$0xff]
  %v52 = vld [vmem:[%s1 + $0xf0] sm:$0xff]
  %v53 = vld [vmem:[%s1 + $0xf8] sm:$0xff]
  %v54 = vld [vmem:[%s1 + $0x100] sm:$0xff]
  %v55 = vld [vmem:[%s1 + $0x108] sm:$0xff]
  %v56 = vld [vmem:[%s1 + $0x110] sm:$0xff]
  %v57 = vld [vmem:[%s1 + $0x118] sm:$0xff]
  %v58 = vld [vmem:[%s1 + $0x120] sm:$0xff]
  %v59 = vld [vmem:[%s1 + $0x128] sm:$0xff]
  %v60 = vld [vmem:[%s1 + $0x130] sm:$0xff]
  %v61 = vld [vmem:[%s1 + $0x138] sm:$0xff]
  %v62 = vld [vmem:[%s1 + $0x140] sm:$0xff]
  %v63 = vld [vmem:[%s1 + $0x148] sm:$0xff]
  %v64 = vld [vmem:[%s1 + $0x150] sm:$0xff]
  %v65 = vld [vmem:[%s1 + $0x158] sm:$0xff]
  %v66 = vld [vmem:[%s1 + $0x160] sm:$0xff]
  %v67 = vld [vmem:[%s1 + $0x168] sm:$0xff]
  %v68 = vld [vmem:[%s1 + $0x170] sm:$0xff]
  %v69 = vld [vmem:[%s1 + $0x178] sm:$0xff]
  %v70 = vld [vmem:[%s1 + $0x180] sm:$0xff]
  %v71 = vld [vmem:[%s1 + $0x188] sm:$0xff]
  %v72 = vld [vmem:[%s1 + $0x190] sm:$0xff]
  %v73 = vld [vmem:[%s1 + $0x198] sm:$0xff]
  %v74 = vld [vmem:[%s1 + $0x1a0] sm:$0xff]
  %v75 = vld [vmem:[%s1 + $0x1a8] sm:$0xff]
  %v76 = vld [vmem:[%s1 + $0x1b0] sm:$0xff]
  %v77 = vld [vmem:[%s1 + $0x1b8] sm:$0xff]
  %v78 = vld [vmem:[%s1 + $0x1c0] sm:$0xff]
  %v79 = vld [vmem:[%s1 + $0x1c8] sm:$0xff]
  %v80 = vld [vmem:[%s1 + $0x1d0] sm:$0xff]
  %v81 = vld [vmem:[%s1 + $0x1d8] sm:$0xff]
  %v82 = vld [vmem:[%s1 + $0x1e0] sm:$0xff]
  %v83 = vld [vmem:[%s1 + $0x1e8] sm:$0xff]
  %v84 = vld [vmem:[%s1 + $0x1f0] sm:$0xff]
  %v85 = vld [vmem:[%s1 + $0x1f8] sm:$0xff]
  %v86 = vld [vmem:[%s1 + $0x200] sm:$0xff]
  %v87 = vld [vmem:[%s1 + $0x208] sm:$0xff]
  %v88 = vld [vmem:[%s1 + $0x210] sm:$0xff]
  %v89 = vld [vmem:[%s1 + $0x218] sm:$0xff]
  %v90 = vld [vmem:[%s1 + $0x220] sm:$0xff]
  %v91 = vld [vmem:[%s1 + $0x228] sm:$0xff]
  %v92 = vld [vmem:[%s1 + $0x230] sm:$0xff]
  %v93 = vld [vmem:[%s1 + $0x238] sm:$0xff]
  %v94 = vld [vmem:[%s1 + $0x240] sm:$0xff]
  %v95 = vld [vmem:[%s1 + $0x248] sm:$0xff]
  %v96 = vld [vmem:[%s1 + $0x250] sm:$0xff]
  %v97 = vld [vmem:[%s1 + $0x258] sm:$0xff]
  %v98 = vld [vmem:[%s1 + $0x260] sm:$0xff]
  %v99 = vld [vmem:[%s1 + $0x268] sm:$0xff]
  %v100 = vld [vmem:[%s1 + $0x270] sm:$0xff]
  %v101 = vld [vmem:[%s1 + $0x278] sm:$0xff]
  %v102 = vld [vmem:[%s1 + $0x280] sm:$0xff]
  %v103 = vld [vmem:[%s1 + $0x288] sm:$0xff]
  %v104 = vld [vmem:[%s1 + $0x290] sm:$0xff]
  %v105 = vld [vmem:[%s1 + $0x298] sm:$0xff]
  %v106 = vld [vmem:[%s1 + $0x2a0] sm:$0xff]
  %v107 = vld [vmem:[%s1 + $0x2a8] sm:$0xff]
  %v108 = vld [vmem:[%s1 + $0x2b0] sm:$0xff]
  %v109 = vld [vmem:[%s1 + $0x2b8] sm:$0xff]
  %v110 = vld [vmem:[%s1 + $0x2c0] sm:$0xff]
  %v111 = vld [vmem:[%s1 + $0x2c8] sm:$0xff]
  %v112 = vld [vmem:[%s1 + $0x2d0] sm:$0xff]
  %v113 = vld [vmem:[%s1 + $0x2d8] sm:$0xff]
  %v114 = vld [vmem:[%s1 + $0x2e0] sm:$0xff]
  %v115 = vld [vmem:[%s1 + $0x2e8] sm:$0xff]
  %v116 = vld [vmem:[%s1 + $0x2f0] sm:$0xff]
  %v117 = vld [vmem:[%s1 + $0x2f8] sm:$0xff]
  %v118 = vld [vmem:[%s1 + $0x300] sm:$0xff]
  %v119 = vld [vmem:[%s1 + $0x308] sm:$0xff]
  %v120 = vld [vmem:[%s1 + $0x310] sm:$0xff]
  %v121 = vld [vmem:[%s1 + $0x318] sm:$0xff]
  %v122 = vld [vmem:[%s1 + $0x320] sm:$0xff]
  %v123 = vld [vmem:[%s1 + $0x328] sm:$0xff]
  %v124 = vld [vmem:[%s1 + $0x330] sm:$0xff]
  %v125 = vld [vmem:[%s1 + $0x338] sm:$0xff]
  %v126 = vld [vmem:[%s1 + $0x340] sm:$0xff]
  %v127 = vld [vmem:[%s1 + $0x348] sm:$0xff]
  %v128 = vld [vmem:[%s1 + $0x350] sm:$0xff]
  %v129 = vld [vmem:[%s1 + $0x358] sm:$0xff]
  %v130 = vld [vmem:[%s1 + $0x360] sm:$0xff]
  %v131 = vld [vmem:[%s1 + $0x368] sm:$0xff]
  %v132 = vld [vmem:[%s1 + $0x370] sm:$0xff]
  %v133 = vld [vmem:[%s1 + $0x378] sm:$0xff]
  %v134 = vld [vmem:[%s1 + $0x380] sm:$0xff]
  %v135 = vld [vmem:[%s1 + $0x388] sm:$0xff]
  %v136 = vld [vmem:[%s1 + $0x390] sm:$0xff]
  %v137 = vld [vmem:[%s1 + $0x398] sm:$0xff]
  %v138 = vld [vmem:[%s1 + $0x3a0] sm:$0xff]
  %v139 = vld [vmem:[%s1 + $0x3a8] sm:$0xff]
  %v140 = vld [vmem:[%s1 + $0x3b0] sm:$0xff]
  %v141 = vld [vmem:[%s1 + $0x3b8] sm:$0xff]
  %v142 = vld [vmem:[%s1 + $0x3c0] sm:$0xff]
  %v143 = vld [vmem:[%s1 + $0x3c8] sm:$0xff]
  %v144 = vld [vmem:[%s1 + $0x3d0] sm:$0xff]
  %v145 = vld [vmem:[%s1 + $0x3d8] sm:$0xff]
  %v146 = vld [vmem:[%s1 + $0x3e0] sm:$0xff]
  %v147 = vld [vmem:[%s1 + $0x3e8] sm:$0xff]
  %v148 = vld [vmem:[%s1 + $0x3f0] sm:$0xff]
  %v149 = vld [vmem:[%s1 + $0x3f8] sm:$0xff]
  %v150 = vld [vmem:[%s2] sm:$0x1]
  %v152 = vperm.slane %v150, 0
  %v154 = vand.u32 %v37, 4294901760
  %155 = vmatpush.msra.mxu0 %v154
  %v156 = vand.u32 %v36, 4294901760
  %157 = vmatpush.msra.mxu0 %v156
  %v158 = vand.u32 %v35, 4294901760
  %159 = vmatpush.msra.mxu0 %v158
  %v160 = vand.u32 %v34, 4294901760
  %161 = vmatpush.msra.mxu0 %v160
  %v162 = vand.u32 %v33, 4294901760
  %163 = vmatpush.msra.mxu0 %v162
  %v164 = vand.u32 %v32, 4294901760
  %165 = vmatpush.msra.mxu0 %v164
  %v166 = vand.u32 %v31, 4294901760
  %167 = vmatpush.msra.mxu0 %v166
  %v168 = vand.u32 %v30, 4294901760
  %169 = vmatpush.msra.mxu0 %v168
  %v170 = vand.u32 %v29, 4294901760
  %171 = vmatpush.msra.mxu0 %v170
  %v172 = vand.u32 %v28, 4294901760
  %173 = vmatpush.msra.mxu0 %v172
  %v174 = vand.u32 %v27, 4294901760
  %175 = vmatpush.msra.mxu0 %v174
  %v176 = vand.u32 %v26, 4294901760
  %177 = vmatpush.msra.mxu0 %v176
  %v178 = vand.u32 %v25, 4294901760
  %179 = vmatpush.msra.mxu0 %v178
  %v180 = vand.u32 %v24, 4294901760
  %181 = vmatpush.msra.mxu0 %v180
  %v182 = vand.u32 %v23, 4294901760
  %183 = vmatpush.msra.mxu0 %v182
  %v184 = vand.u32 %v22, 4294901760
  %185 = vmatpush.msra.mxu0 %v184
  %v186 = vand.u32 %v14, 4294901760
  %v187 = vsub.f32 %v14, %v186
  %v188 = vand.u32 %v187, 4294901760
  %v189 = vsub.f32 %v187, %v188
  %v190 = vand.u32 %v189, 4294901760
  %191 = vmatmul.f32.gmra.mxu0 %v190
  %v192 = vpop.f32.mrf.mxu0
  %v193 = vadd.f32 %v152, %v192
  %194 = vdwg.mxu0
  %v195 = vand.u32 %v37, 4294901760
  %v196 = vsub.f32 %v37, %v195
  %v197 = vand.u32 %v196, 4294901760
  %v198 = vsub.f32 %v196, %v197
  %v199 = vand.u32 %v198, 4294901760
  %200 = vmatpush.msra.mxu0 %v199
  %v201 = vand.u32 %v36, 4294901760
  %v202 = vsub.f32 %v36, %v201
  %v203 = vand.u32 %v202, 4294901760
  %v204 = vsub.f32 %v202, %v203
  %v205 = vand.u32 %v204, 4294901760
  %206 = vmatpush.msra.mxu0 %v205
  %v207 = vand.u32 %v35, 4294901760
  %v208 = vsub.f32 %v35, %v207
  %v209 = vand.u32 %v208, 4294901760
  %v210 = vsub.f32 %v208, %v209
  %v211 = vand.u32 %v210, 4294901760
  %212 = vmatpush.msra.mxu0 %v211
  %v213 = vand.u32 %v34, 4294901760
  %v214 = vsub.f32 %v34, %v213
  %v215 = vand.u32 %v214, 4294901760
  %v216 = vsub.f32 %v214, %v215
  %v217 = vand.u32 %v216, 4294901760
  %218 = vmatpush.msra.mxu0 %v217
  %v219 = vand.u32 %v33, 4294901760
  %v220 = vsub.f32 %v33, %v219
  %v221 = vand.u32 %v220, 4294901760
  %v222 = vsub.f32 %v220, %v221
  %v223 = vand.u32 %v222, 4294901760
  %224 = vmatpush.msra.mxu0 %v223
  %v225 = vand.u32 %v32, 4294901760
  %v226 = vsub.f32 %v32, %v225
  %v227 = vand.u32 %v226, 4294901760
  %v228 = vsub.f32 %v226, %v227
  %v229 = vand.u32 %v228, 4294901760
  %230 = vmatpush.msra.mxu0 %v229
  %v231 = vand.u32 %v31, 4294901760
  %v232 = vsub.f32 %v31, %v231
  %v233 = vand.u32 %v232, 4294901760
  %v234 = vsub.f32 %v232, %v233
  %v235 = vand.u32 %v234, 4294901760
  %236 = vmatpush.msra.mxu0 %v235
  %v237 = vand.u32 %v30, 4294901760
  %v238 = vsub.f32 %v30, %v237
  %v239 = vand.u32 %v238, 4294901760
  %v240 = vsub.f32 %v238, %v239
  %v241 = vand.u32 %v240, 4294901760
  %242 = vmatpush.msra.mxu0 %v241
  %v243 = vand.u32 %v29, 4294901760
  %v244 = vsub.f32 %v29, %v243
  %v245 = vand.u32 %v244, 4294901760
  %v246 = vsub.f32 %v244, %v245
  %v247 = vand.u32 %v246, 4294901760
  %248 = vmatpush.msra.mxu0 %v247
  %v249 = vand.u32 %v28, 4294901760
  %v250 = vsub.f32 %v28, %v249
  %v251 = vand.u32 %v250, 4294901760
  %v252 = vsub.f32 %v250, %v251
  %v253 = vand.u32 %v252, 4294901760
  %254 = vmatpush.msra.mxu0 %v253
  %v255 = vand.u32 %v27, 4294901760
  %v256 = vsub.f32 %v27, %v255
  %v257 = vand.u32 %v256, 4294901760
  %v258 = vsub.f32 %v256, %v257
  %v259 = vand.u32 %v258, 4294901760
  %260 = vmatpush.msra.mxu0 %v259
  %v261 = vand.u32 %v26, 4294901760
  %v262 = vsub.f32 %v26, %v261
  %v263 = vand.u32 %v262, 4294901760
  %v264 = vsub.f32 %v262, %v263
  %v265 = vand.u32 %v264, 4294901760
  %266 = vmatpush.msra.mxu0 %v265
  %v267 = vand.u32 %v25, 4294901760
  %v268 = vsub.f32 %v25, %v267
  %v269 = vand.u32 %v268, 4294901760
  %v270 = vsub.f32 %v268, %v269
  %v271 = vand.u32 %v270, 4294901760
  %272 = vmatpush.msra.mxu0 %v271
  %v273 = vand.u32 %v24, 4294901760
  %v274 = vsub.f32 %v24, %v273
  %v275 = vand.u32 %v274, 4294901760
  %v276 = vsub.f32 %v274, %v275
  %v277 = vand.u32 %v276, 4294901760
  %278 = vmatpush.msra.mxu0 %v277
  %v279 = vand.u32 %v23, 4294901760
  %v280 = vsub.f32 %v23, %v279
  %v281 = vand.u32 %v280, 4294901760
  %v282 = vsub.f32 %v280, %v281
  %v283 = vand.u32 %v282, 4294901760
  %284 = vmatpush.msra.mxu0 %v283
  %v285 = vand.u32 %v22, 4294901760
  %v286 = vsub.f32 %v22, %v285
  %v287 = vand.u32 %v286, 4294901760
  %v288 = vsub.f32 %v286, %v287
  %v289 = vand.u32 %v288, 4294901760
  %290 = vmatpush.msra.mxu0 %v289
  %v291 = vand.u32 %v14, 4294901760
  %292 = vmatmul.f32.gmra.mxu0 %v291
  %v293 = vpop.f32.mrf.mxu0
  %v294 = vadd.f32 %v193, %v293
  %295 = vdwg.mxu0
  %v296 = vand.u32 %v37, 4294901760
  %v297 = vsub.f32 %v37, %v296
  %298 = vmatpush.msra.mxu0 %v297
  %v299 = vand.u32 %v36, 4294901760
  %v300 = vsub.f32 %v36, %v299
  %301 = vmatpush.msra.mxu0 %v300
  %v302 = vand.u32 %v35, 4294901760
  %v303 = vsub.f32 %v35, %v302
  %304 = vmatpush.msra.mxu0 %v303
  %v305 = vand.u32 %v34, 4294901760
  %v306 = vsub.f32 %v34, %v305
  %307 = vmatpush.msra.mxu0 %v306
  %v308 = vand.u32 %v33, 4294901760
  %v309 = vsub.f32 %v33, %v308
  %310 = vmatpush.msra.mxu0 %v309
  %v311 = vand.u32 %v32, 4294901760
  %v312 = vsub.f32 %v32, %v311
  %313 = vmatpush.msra.mxu0 %v312
  %v314 = vand.u32 %v31, 4294901760
  %v315 = vsub.f32 %v31, %v314
  %316 = vmatpush.msra.mxu0 %v315
  %v317 = vand.u32 %v30, 4294901760
  %v318 = vsub.f32 %v30, %v317
  %319 = vmatpush.msra.mxu0 %v318
  %v320 = vand.u32 %v29, 4294901760
  %v321 = vsub.f32 %v29, %v320
  %322 = vmatpush.msra.mxu0 %v321
  %v323 = vand.u32 %v28, 4294901760
  %v324 = vsub.f32 %v28, %v323
  %325 = vmatpush.msra.mxu0 %v324
  %v326 = vand.u32 %v27, 4294901760
  %v327 = vsub.f32 %v27, %v326
  %328 = vmatpush.msra.mxu0 %v327
  %v329 = vand.u32 %v26, 4294901760
  %v330 = vsub.f32 %v26, %v329
  %331 = vmatpush.msra.mxu0 %v330
  %v332 = vand.u32 %v25, 4294901760
  %v333 = vsub.f32 %v25, %v332
  %334 = vmatpush.msra.mxu0 %v333
  %v335 = vand.u32 %v24, 4294901760
  %v336 = vsub.f32 %v24, %v335
  %337 = vmatpush.msra.mxu0 %v336
  %v338 = vand.u32 %v23, 4294901760
  %v339 = vsub.f32 %v23, %v338
  %340 = vmatpush.msra.mxu0 %v339
  %v341 = vand.u32 %v22, 4294901760
  %v342 = vsub.f32 %v22, %v341
  %343 = vmatpush.msra.mxu0 %v342
  %v344 = vand.u32 %v14, 4294901760
  %v345 = vsub.f32 %v14, %v344
  %346 = vmatmul.f32.gmra.mxu0 %v345
  %v347 = vpop.f32.mrf.mxu0
  %v348 = vadd.f32 %v294, %v347
  %349 = vdwg.mxu0
  %v350 = vand.u32 %v37, 4294901760
  %351 = vmatpush.msra.mxu0 %v350
  %v352 = vand.u32 %v36, 4294901760
  %353 = vmatpush.msra.mxu0 %v352
  %v354 = vand.u32 %v35, 4294901760
  %355 = vmatpush.msra.mxu0 %v354
  %v356 = vand.u32 %v34, 4294901760
  %357 = vmatpush.msra.mxu0 %v356
  %v358 = vand.u32 %v33, 4294901760
  %359 = vmatpush.msra.mxu0 %v358
  %v360 = vand.u32 %v32, 4294901760
  %361 = vmatpush.msra.mxu0 %v360
  %v362 = vand.u32 %v31, 4294901760
  %363 = vmatpush.msra.mxu0 %v362
  %v364 = vand.u32 %v30, 4294901760
  %365 = vmatpush.msra.mxu0 %v364
  %v366 = vand.u32 %v29, 4294901760
  %367 = vmatpush.msra.mxu0 %v366
  %v368 = vand.u32 %v28, 4294901760
  %369 = vmatpush.msra.mxu0 %v368
  %v370 = vand.u32 %v27, 4294901760
  %371 = vmatpush.msra.mxu0 %v370
  %v372 = vand.u32 %v26, 4294901760
  %373 = vmatpush.msra.mxu0 %v372
  %v374 = vand.u32 %v25, 4294901760
  %375 = vmatpush.msra.mxu0 %v374
  %v376 = vand.u32 %v24, 4294901760
  %377 = vmatpush.msra.mxu0 %v376
  %v378 = vand.u32 %v23, 4294901760
  %379 = vmatpush.msra.mxu0 %v378
  %v380 = vand.u32 %v22, 4294901760
  %381 = vmatpush.msra.mxu0 %v380
  %v382 = vand.u32 %v14, 4294901760
  %v383 = vsub.f32 %v14, %v382
  %v384 = vand.u32 %v383, 4294901760
  %385 = vmatmul.f32.gmra.mxu0 %v384
  %v386 = vpop.f32.mrf.mxu0
  %v387 = vadd.f32 %v348, %v386
  %388 = vdwg.mxu0
  %v389 = vand.u32 %v37, 4294901760
  %v390 = vsub.f32 %v37, %v389
  %v391 = vand.u32 %v390, 4294901760
  %392 = vmatpush.msra.mxu0 %v391
  %v393 = vand.u32 %v36, 4294901760
  %v394 = vsub.f32 %v36, %v393
  %v395 = vand.u32 %v394, 4294901760
  %396 = vmatpush.msra.mxu0 %v395
  %v397 = vand.u32 %v35, 4294901760
  %v398 = vsub.f32 %v35, %v397
  %v399 = vand.u32 %v398, 4294901760
  %400 = vmatpush.msra.mxu0 %v399
  %v401 = vand.u32 %v34, 4294901760
  %v402 = vsub.f32 %v34, %v401
  %v403 = vand.u32 %v402, 4294901760
  %404 = vmatpush.msra.mxu0 %v403
  %v405 = vand.u32 %v33, 4294901760
  %v406 = vsub.f32 %v33, %v405
  %v407 = vand.u32 %v406, 4294901760
  %408 = vmatpush.msra.mxu0 %v407
  %v409 = vand.u32 %v32, 4294901760
  %v410 = vsub.f32 %v32, %v409
  %v411 = vand.u32 %v410, 4294901760
  %412 = vmatpush.msra.mxu0 %v411
  %v413 = vand.u32 %v31, 4294901760
  %v414 = vsub.f32 %v31, %v413
  %v415 = vand.u32 %v414, 4294901760
  %416 = vmatpush.msra.mxu0 %v415
  %v417 = vand.u32 %v30, 4294901760
  %v418 = vsub.f32 %v30, %v417
  %v419 = vand.u32 %v418, 4294901760
  %420 = vmatpush.msra.mxu0 %v419
  %v421 = vand.u32 %v29, 4294901760
  %v422 = vsub.f32 %v29, %v421
  %v423 = vand.u32 %v422, 4294901760
  %424 = vmatpush.msra.mxu0 %v423
  %v425 = vand.u32 %v28, 4294901760
  %v426 = vsub.f32 %v28, %v425
  %v427 = vand.u32 %v426, 4294901760
  %428 = vmatpush.msra.mxu0 %v427
  %v429 = vand.u32 %v27, 4294901760
  %v430 = vsub.f32 %v27, %v429
  %v431 = vand.u32 %v430, 4294901760
  %432 = vmatpush.msra.mxu0 %v431
  %v433 = vand.u32 %v26, 4294901760
  %v434 = vsub.f32 %v26, %v433
  %v435 = vand.u32 %v434, 4294901760
  %436 = vmatpush.msra.mxu0 %v435
  %v437 = vand.u32 %v25, 4294901760
  %v438 = vsub.f32 %v25, %v437
  %v439 = vand.u32 %v438, 4294901760
  %440 = vmatpush.msra.mxu0 %v439
  %v441 = vand.u32 %v24, 4294901760
  %v442 = vsub.f32 %v24, %v441
  %v443 = vand.u32 %v442, 4294901760
  %444 = vmatpush.msra.mxu0 %v443
  %v445 = vand.u32 %v23, 4294901760
  %v446 = vsub.f32 %v23, %v445
  %v447 = vand.u32 %v446, 4294901760
  %448 = vmatpush.msra.mxu0 %v447
  %v449 = vand.u32 %v22, 4294901760
  %v450 = vsub.f32 %v22, %v449
  %v451 = vand.u32 %v450, 4294901760
  %452 = vmatpush.msra.mxu0 %v451
  %v453 = vand.u32 %v14, 4294901760
  %454 = vmatmul.f32.gmra.mxu0 %v453
  %v455 = vpop.f32.mrf.mxu0
  %v456 = vadd.f32 %v387, %v455
  %457 = vdwg.mxu0
  %v458 = vand.u32 %v37, 4294901760
  %459 = vmatpush.msra.mxu0 %v458
  %v460 = vand.u32 %v36, 4294901760
  %461 = vmatpush.msra.mxu0 %v460
  %v462 = vand.u32 %v35, 4294901760
  %463 = vmatpush.msra.mxu0 %v462
  %v464 = vand.u32 %v34, 4294901760
  %465 = vmatpush.msra.mxu0 %v464
  %v466 = vand.u32 %v33, 4294901760
  %467 = vmatpush.msra.mxu0 %v466
  %v468 = vand.u32 %v32, 4294901760
  %469 = vmatpush.msra.mxu0 %v468
  %v470 = vand.u32 %v31, 4294901760
  %471 = vmatpush.msra.mxu0 %v470
  %v472 = vand.u32 %v30, 4294901760
  %473 = vmatpush.msra.mxu0 %v472
  %v474 = vand.u32 %v29, 4294901760
  %475 = vmatpush.msra.mxu0 %v474
  %v476 = vand.u32 %v28, 4294901760
  %477 = vmatpush.msra.mxu0 %v476
  %v478 = vand.u32 %v27, 4294901760
  %479 = vmatpush.msra.mxu0 %v478
  %v480 = vand.u32 %v26, 4294901760
  %481 = vmatpush.msra.mxu0 %v480
  %v482 = vand.u32 %v25, 4294901760
  %483 = vmatpush.msra.mxu0 %v482
  %v484 = vand.u32 %v24, 4294901760
  %485 = vmatpush.msra.mxu0 %v484
  %v486 = vand.u32 %v23, 4294901760
  %487 = vmatpush.msra.mxu0 %v486
  %v488 = vand.u32 %v22, 4294901760
  %489 = vmatpush.msra.mxu0 %v488
  %v490 = vand.u32 %v14, 4294901760
  %491 = vmatmul.f32.gmra.mxu0 %v490
  %v492 = vpop.f32.mrf.mxu0
  %v493 = vadd.f32 %v456, %v492
  %494 = vdwg.mxu0
  %v495 = vand.u32 %v53, 4294901760
  %496 = vmatpush.msra.mxu0 %v495
  %v497 = vand.u32 %v52, 4294901760
  %498 = vmatpush.msra.mxu0 %v497
  %v499 = vand.u32 %v51, 4294901760
  %500 = vmatpush.msra.mxu0 %v499
  %v501 = vand.u32 %v50, 4294901760
  %502 = vmatpush.msra.mxu0 %v501
  %v503 = vand.u32 %v49, 4294901760
  %504 = vmatpush.msra.mxu0 %v503
  %v505 = vand.u32 %v48, 4294901760
  %506 = vmatpush.msra.mxu0 %v505
  %v507 = vand.u32 %v47, 4294901760
  %508 = vmatpush.msra.mxu0 %v507
  %v509 = vand.u32 %v46, 4294901760
  %510 = vmatpush.msra.mxu0 %v509
  %v511 = vand.u32 %v45, 4294901760
  %512 = vmatpush.msra.mxu0 %v511
  %v513 = vand.u32 %v44, 4294901760
  %514 = vmatpush.msra.mxu0 %v513
  %v515 = vand.u32 %v43, 4294901760
  %516 = vmatpush.msra.mxu0 %v515
  %v517 = vand.u32 %v42, 4294901760
  %518 = vmatpush.msra.mxu0 %v517
  %v519 = vand.u32 %v41, 4294901760
  %520 = vmatpush.msra.mxu0 %v519
  %v521 = vand.u32 %v40, 4294901760
  %522 = vmatpush.msra.mxu0 %v521
  %v523 = vand.u32 %v39, 4294901760
  %524 = vmatpush.msra.mxu0 %v523
  %v525 = vand.u32 %v38, 4294901760
  %526 = vmatpush.msra.mxu0 %v525
  %v527 = vand.u32 %v15, 4294901760
  %v528 = vsub.f32 %v15, %v527
  %v529 = vand.u32 %v528, 4294901760
  %v530 = vsub.f32 %v528, %v529
  %v531 = vand.u32 %v530, 4294901760
  %532 = vmatmul.f32.gmra.mxu0 %v531
  %v533 = vpop.f32.mrf.mxu0
  %v534 = vadd.f32 %v493, %v533
  %535 = vdwg.mxu0
  %v536 = vand.u32 %v53, 4294901760
  %v537 = vsub.f32 %v53, %v536
  %v538 = vand.u32 %v537, 4294901760
  %v539 = vsub.f32 %v537, %v538
  %v540 = vand.u32 %v539, 4294901760
  %541 = vmatpush.msra.mxu0 %v540
  %v542 = vand.u32 %v52, 4294901760
  %v543 = vsub.f32 %v52, %v542
  %v544 = vand.u32 %v543, 4294901760
  %v545 = vsub.f32 %v543, %v544
  %v546 = vand.u32 %v545, 4294901760
  %547 = vmatpush.msra.mxu0 %v546
  %v548 = vand.u32 %v51, 4294901760
  %v549 = vsub.f32 %v51, %v548
  %v550 = vand.u32 %v549, 4294901760
  %v551 = vsub.f32 %v549, %v550
  %v552 = vand.u32 %v551, 4294901760
  %553 = vmatpush.msra.mxu0 %v552
  %v554 = vand.u32 %v50, 4294901760
  %v555 = vsub.f32 %v50, %v554
  %v556 = vand.u32 %v555, 4294901760
  %v557 = vsub.f32 %v555, %v556
  %v558 = vand.u32 %v557, 4294901760
  %559 = vmatpush.msra.mxu0 %v558
  %v560 = vand.u32 %v49, 4294901760
  %v561 = vsub.f32 %v49, %v560
  %v562 = vand.u32 %v561, 4294901760
  %v563 = vsub.f32 %v561, %v562
  %v564 = vand.u32 %v563, 4294901760
  %565 = vmatpush.msra.mxu0 %v564
  %v566 = vand.u32 %v48, 4294901760
  %v567 = vsub.f32 %v48, %v566
  %v568 = vand.u32 %v567, 4294901760
  %v569 = vsub.f32 %v567, %v568
  %v570 = vand.u32 %v569, 4294901760
  %571 = vmatpush.msra.mxu0 %v570
  %v572 = vand.u32 %v47, 4294901760
  %v573 = vsub.f32 %v47, %v572
  %v574 = vand.u32 %v573, 4294901760
  %v575 = vsub.f32 %v573, %v574
  %v576 = vand.u32 %v575, 4294901760
  %577 = vmatpush.msra.mxu0 %v576
  %v578 = vand.u32 %v46, 4294901760
  %v579 = vsub.f32 %v46, %v578
  %v580 = vand.u32 %v579, 4294901760
  %v581 = vsub.f32 %v579, %v580
  %v582 = vand.u32 %v581, 4294901760
  %583 = vmatpush.msra.mxu0 %v582
  %v584 = vand.u32 %v45, 4294901760
  %v585 = vsub.f32 %v45, %v584
  %v586 = vand.u32 %v585, 4294901760
  %v587 = vsub.f32 %v585, %v586
  %v588 = vand.u32 %v587, 4294901760
  %589 = vmatpush.msra.mxu0 %v588
  %v590 = vand.u32 %v44, 4294901760
  %v591 = vsub.f32 %v44, %v590
  %v592 = vand.u32 %v591, 4294901760
  %v593 = vsub.f32 %v591, %v592
  %v594 = vand.u32 %v593, 4294901760
  %595 = vmatpush.msra.mxu0 %v594
  %v596 = vand.u32 %v43, 4294901760
  %v597 = vsub.f32 %v43, %v596
  %v598 = vand.u32 %v597, 4294901760
  %v599 = vsub.f32 %v597, %v598
  %v600 = vand.u32 %v599, 4294901760
  %601 = vmatpush.msra.mxu0 %v600
  %v602 = vand.u32 %v42, 4294901760
  %v603 = vsub.f32 %v42, %v602
  %v604 = vand.u32 %v603, 4294901760
  %v605 = vsub.f32 %v603, %v604
  %v606 = vand.u32 %v605, 4294901760
  %607 = vmatpush.msra.mxu0 %v606
  %v608 = vand.u32 %v41, 4294901760
  %v609 = vsub.f32 %v41, %v608
  %v610 = vand.u32 %v609, 4294901760
  %v611 = vsub.f32 %v609, %v610
  %v612 = vand.u32 %v611, 4294901760
  %613 = vmatpush.msra.mxu0 %v612
  %v614 = vand.u32 %v40, 4294901760
  %v615 = vsub.f32 %v40, %v614
  %v616 = vand.u32 %v615, 4294901760
  %v617 = vsub.f32 %v615, %v616
  %v618 = vand.u32 %v617, 4294901760
  %619 = vmatpush.msra.mxu0 %v618
  %v620 = vand.u32 %v39, 4294901760
  %v621 = vsub.f32 %v39, %v620
  %v622 = vand.u32 %v621, 4294901760
  %v623 = vsub.f32 %v621, %v622
  %v624 = vand.u32 %v623, 4294901760
  %625 = vmatpush.msra.mxu0 %v624
  %v626 = vand.u32 %v38, 4294901760
  %v627 = vsub.f32 %v38, %v626
  %v628 = vand.u32 %v627, 4294901760
  %v629 = vsub.f32 %v627, %v628
  %v630 = vand.u32 %v629, 4294901760
  %631 = vmatpush.msra.mxu0 %v630
  %v632 = vand.u32 %v15, 4294901760
  %633 = vmatmul.f32.gmra.mxu0 %v632
  %v634 = vpop.f32.mrf.mxu0
  %v635 = vadd.f32 %v534, %v634
  %636 = vdwg.mxu0
  %v637 = vand.u32 %v53, 4294901760
  %v638 = vsub.f32 %v53, %v637
  %639 = vmatpush.msra.mxu0 %v638
  %v640 = vand.u32 %v52, 4294901760
  %v641 = vsub.f32 %v52, %v640
  %642 = vmatpush.msra.mxu0 %v641
  %v643 = vand.u32 %v51, 4294901760
  %v644 = vsub.f32 %v51, %v643
  %645 = vmatpush.msra.mxu0 %v644
  %v646 = vand.u32 %v50, 4294901760
  %v647 = vsub.f32 %v50, %v646
  %648 = vmatpush.msra.mxu0 %v647
  %v649 = vand.u32 %v49, 4294901760
  %v650 = vsub.f32 %v49, %v649
  %651 = vmatpush.msra.mxu0 %v650
  %v652 = vand.u32 %v48, 4294901760
  %v653 = vsub.f32 %v48, %v652
  %654 = vmatpush.msra.mxu0 %v653
  %v655 = vand.u32 %v47, 4294901760
  %v656 = vsub.f32 %v47, %v655
  %657 = vmatpush.msra.mxu0 %v656
  %v658 = vand.u32 %v46, 4294901760
  %v659 = vsub.f32 %v46, %v658
  %660 = vmatpush.msra.mxu0 %v659
  %v661 = vand.u32 %v45, 4294901760
  %v662 = vsub.f32 %v45, %v661
  %663 = vmatpush.msra.mxu0 %v662
  %v664 = vand.u32 %v44, 4294901760
  %v665 = vsub.f32 %v44, %v664
  %666 = vmatpush.msra.mxu0 %v665
  %v667 = vand.u32 %v43, 4294901760
  %v668 = vsub.f32 %v43, %v667
  %669 = vmatpush.msra.mxu0 %v668
  %v670 = vand.u32 %v42, 4294901760
  %v671 = vsub.f32 %v42, %v670
  %672 = vmatpush.msra.mxu0 %v671
  %v673 = vand.u32 %v41, 4294901760
  %v674 = vsub.f32 %v41, %v673
  %675 = vmatpush.msra.mxu0 %v674
  %v676 = vand.u32 %v40, 4294901760
  %v677 = vsub.f32 %v40, %v676
  %678 = vmatpush.msra.mxu0 %v677
  %v679 = vand.u32 %v39, 4294901760
  %v680 = vsub.f32 %v39, %v679
  %681 = vmatpush.msra.mxu0 %v680
  %v682 = vand.u32 %v38, 4294901760
  %v683 = vsub.f32 %v38, %v682
  %684 = vmatpush.msra.mxu0 %v683
  %v685 = vand.u32 %v15, 4294901760
  %v686 = vsub.f32 %v15, %v685
  %687 = vmatmul.f32.gmra.mxu0 %v686
  %v688 = vpop.f32.mrf.mxu0
  %v689 = vadd.f32 %v635, %v688
  %690 = vdwg.mxu0
  %v691 = vand.u32 %v53, 4294901760
  %692 = vmatpush.msra.mxu0 %v691
  %v693 = vand.u32 %v52, 4294901760
  %694 = vmatpush.msra.mxu0 %v693
  %v695 = vand.u32 %v51, 4294901760
  %696 = vmatpush.msra.mxu0 %v695
  %v697 = vand.u32 %v50, 4294901760
  %698 = vmatpush.msra.mxu0 %v697
  %v699 = vand.u32 %v49, 4294901760
  %700 = vmatpush.msra.mxu0 %v699
  %v701 = vand.u32 %v48, 4294901760
  %702 = vmatpush.msra.mxu0 %v701
  %v703 = vand.u32 %v47, 4294901760
  %704 = vmatpush.msra.mxu0 %v703
  %v705 = vand.u32 %v46, 4294901760
  %706 = vmatpush.msra.mxu0 %v705
  %v707 = vand.u32 %v45, 4294901760
  %708 = vmatpush.msra.mxu0 %v707
  %v709 = vand.u32 %v44, 4294901760
  %710 = vmatpush.msra.mxu0 %v709
  %v711 = vand.u32 %v43, 4294901760
  %712 = vmatpush.msra.mxu0 %v711
  %v713 = vand.u32 %v42, 4294901760
  %714 = vmatpush.msra.mxu0 %v713
  %v715 = vand.u32 %v41, 4294901760
  %716 = vmatpush.msra.mxu0 %v715
  %v717 = vand.u32 %v40, 4294901760
  %718 = vmatpush.msra.mxu0 %v717
  %v719 = vand.u32 %v39, 4294901760
  %720 = vmatpush.msra.mxu0 %v719
  %v721 = vand.u32 %v38, 4294901760
  %722 = vmatpush.msra.mxu0 %v721
  %v723 = vand.u32 %v15, 4294901760
  %v724 = vsub.f32 %v15, %v723
  %v725 = vand.u32 %v724, 4294901760
  %726 = vmatmul.f32.gmra.mxu0 %v725
  %v727 = vpop.f32.mrf.mxu0
  %v728 = vadd.f32 %v689, %v727
  %729 = vdwg.mxu0
  %v730 = vand.u32 %v53, 4294901760
  %v731 = vsub.f32 %v53, %v730
  %v732 = vand.u32 %v731, 4294901760
  %733 = vmatpush.msra.mxu0 %v732
  %v734 = vand.u32 %v52, 4294901760
  %v735 = vsub.f32 %v52, %v734
  %v736 = vand.u32 %v735, 4294901760
  %737 = vmatpush.msra.mxu0 %v736
  %v738 = vand.u32 %v51, 4294901760
  %v739 = vsub.f32 %v51, %v738
  %v740 = vand.u32 %v739, 4294901760
  %741 = vmatpush.msra.mxu0 %v740
  %v742 = vand.u32 %v50, 4294901760
  %v743 = vsub.f32 %v50, %v742
  %v744 = vand.u32 %v743, 4294901760
  %745 = vmatpush.msra.mxu0 %v744
  %v746 = vand.u32 %v49, 4294901760
  %v747 = vsub.f32 %v49, %v746
  %v748 = vand.u32 %v747, 4294901760
  %749 = vmatpush.msra.mxu0 %v748
  %v750 = vand.u32 %v48, 4294901760
  %v751 = vsub.f32 %v48, %v750
  %v752 = vand.u32 %v751, 4294901760
  %753 = vmatpush.msra.mxu0 %v752
  %v754 = vand.u32 %v47, 4294901760
  %v755 = vsub.f32 %v47, %v754
  %v756 = vand.u32 %v755, 4294901760
  %757 = vmatpush.msra.mxu0 %v756
  %v758 = vand.u32 %v46, 4294901760
  %v759 = vsub.f32 %v46, %v758
  %v760 = vand.u32 %v759, 4294901760
  %761 = vmatpush.msra.mxu0 %v760
  %v762 = vand.u32 %v45, 4294901760
  %v763 = vsub.f32 %v45, %v762
  %v764 = vand.u32 %v763, 4294901760
  %765 = vmatpush.msra.mxu0 %v764
  %v766 = vand.u32 %v44, 4294901760
  %v767 = vsub.f32 %v44, %v766
  %v768 = vand.u32 %v767, 4294901760
  %769 = vmatpush.msra.mxu0 %v768
  %v770 = vand.u32 %v43, 4294901760
  %v771 = vsub.f32 %v43, %v770
  %v772 = vand.u32 %v771, 4294901760
  %773 = vmatpush.msra.mxu0 %v772
  %v774 = vand.u32 %v42, 4294901760
  %v775 = vsub.f32 %v42, %v774
  %v776 = vand.u32 %v775, 4294901760
  %777 = vmatpush.msra.mxu0 %v776
  %v778 = vand.u32 %v41, 4294901760
  %v779 = vsub.f32 %v41, %v778
  %v780 = vand.u32 %v779, 4294901760
  %781 = vmatpush.msra.mxu0 %v780
  %v782 = vand.u32 %v40, 4294901760
  %v783 = vsub.f32 %v40, %v782
  %v784 = vand.u32 %v783, 4294901760
  %785 = vmatpush.msra.mxu0 %v784
  %v786 = vand.u32 %v39, 4294901760
  %v787 = vsub.f32 %v39, %v786
  %v788 = vand.u32 %v787, 4294901760
  %789 = vmatpush.msra.mxu0 %v788
  %v790 = vand.u32 %v38, 4294901760
  %v791 = vsub.f32 %v38, %v790
  %v792 = vand.u32 %v791, 4294901760
  %793 = vmatpush.msra.mxu0 %v792
  %v794 = vand.u32 %v15, 4294901760
  %795 = vmatmul.f32.gmra.mxu0 %v794
  %v796 = vpop.f32.mrf.mxu0
  %v797 = vadd.f32 %v728, %v796
  %798 = vdwg.mxu0
  %v799 = vand.u32 %v53, 4294901760
  %800 = vmatpush.msra.mxu0 %v799
  %v801 = vand.u32 %v52, 4294901760
  %802 = vmatpush.msra.mxu0 %v801
  %v803 = vand.u32 %v51, 4294901760
  %804 = vmatpush.msra.mxu0 %v803
  %v805 = vand.u32 %v50, 4294901760
  %806 = vmatpush.msra.mxu0 %v805
  %v807 = vand.u32 %v49, 4294901760
  %808 = vmatpush.msra.mxu0 %v807
  %v809 = vand.u32 %v48, 4294901760
  %810 = vmatpush.msra.mxu0 %v809
  %v811 = vand.u32 %v47, 4294901760
  %812 = vmatpush.msra.mxu0 %v811
  %v813 = vand.u32 %v46, 4294901760
  %814 = vmatpush.msra.mxu0 %v813
  %v815 = vand.u32 %v45, 4294901760
  %816 = vmatpush.msra.mxu0 %v815
  %v817 = vand.u32 %v44, 4294901760
  %818 = vmatpush.msra.mxu0 %v817
  %v819 = vand.u32 %v43, 4294901760
  %820 = vmatpush.msra.mxu0 %v819
  %v821 = vand.u32 %v42, 4294901760
  %822 = vmatpush.msra.mxu0 %v821
  %v823 = vand.u32 %v41, 4294901760
  %824 = vmatpush.msra.mxu0 %v823
  %v825 = vand.u32 %v40, 4294901760
  %826 = vmatpush.msra.mxu0 %v825
  %v827 = vand.u32 %v39, 4294901760
  %828 = vmatpush.msra.mxu0 %v827
  %v829 = vand.u32 %v38, 4294901760
  %830 = vmatpush.msra.mxu0 %v829
  %v831 = vand.u32 %v15, 4294901760
  %832 = vmatmul.f32.gmra.mxu0 %v831
  %v833 = vpop.f32.mrf.mxu0
  %v834 = vadd.f32 %v797, %v833
  %835 = vdwg.mxu0
  %v836 = vand.u32 %v69, 4294901760
  %837 = vmatpush.msra.mxu0 %v836
  %v838 = vand.u32 %v68, 4294901760
  %839 = vmatpush.msra.mxu0 %v838
  %v840 = vand.u32 %v67, 4294901760
  %841 = vmatpush.msra.mxu0 %v840
  %v842 = vand.u32 %v66, 4294901760
  %843 = vmatpush.msra.mxu0 %v842
  %v844 = vand.u32 %v65, 4294901760
  %845 = vmatpush.msra.mxu0 %v844
  %v846 = vand.u32 %v64, 4294901760
  %847 = vmatpush.msra.mxu0 %v846
  %v848 = vand.u32 %v63, 4294901760
  %849 = vmatpush.msra.mxu0 %v848
  %v850 = vand.u32 %v62, 4294901760
  %851 = vmatpush.msra.mxu0 %v850
  %v852 = vand.u32 %v61, 4294901760
  %853 = vmatpush.msra.mxu0 %v852
  %v854 = vand.u32 %v60, 4294901760
  %855 = vmatpush.msra.mxu0 %v854
  %v856 = vand.u32 %v59, 4294901760
  %857 = vmatpush.msra.mxu0 %v856
  %v858 = vand.u32 %v58, 4294901760
  %859 = vmatpush.msra.mxu0 %v858
  %v860 = vand.u32 %v57, 4294901760
  %861 = vmatpush.msra.mxu0 %v860
  %v862 = vand.u32 %v56, 4294901760
  %863 = vmatpush.msra.mxu0 %v862
  %v864 = vand.u32 %v55, 4294901760
  %865 = vmatpush.msra.mxu0 %v864
  %v866 = vand.u32 %v54, 4294901760
  %867 = vmatpush.msra.mxu0 %v866
  %v868 = vand.u32 %v16, 4294901760
  %v869 = vsub.f32 %v16, %v868
  %v870 = vand.u32 %v869, 4294901760
  %v871 = vsub.f32 %v869, %v870
  %v872 = vand.u32 %v871, 4294901760
  %873 = vmatmul.f32.gmra.mxu0 %v872
  %v874 = vpop.f32.mrf.mxu0
  %v875 = vadd.f32 %v834, %v874
  %876 = vdwg.mxu0
  %v877 = vand.u32 %v69, 4294901760
  %v878 = vsub.f32 %v69, %v877
  %v879 = vand.u32 %v878, 4294901760
  %v880 = vsub.f32 %v878, %v879
  %v881 = vand.u32 %v880, 4294901760
  %882 = vmatpush.msra.mxu0 %v881
  %v883 = vand.u32 %v68, 4294901760
  %v884 = vsub.f32 %v68, %v883
  %v885 = vand.u32 %v884, 4294901760
  %v886 = vsub.f32 %v884, %v885
  %v887 = vand.u32 %v886, 4294901760
  %888 = vmatpush.msra.mxu0 %v887
  %v889 = vand.u32 %v67, 4294901760
  %v890 = vsub.f32 %v67, %v889
  %v891 = vand.u32 %v890, 4294901760
  %v892 = vsub.f32 %v890, %v891
  %v893 = vand.u32 %v892, 4294901760
  %894 = vmatpush.msra.mxu0 %v893
  %v895 = vand.u32 %v66, 4294901760
  %v896 = vsub.f32 %v66, %v895
  %v897 = vand.u32 %v896, 4294901760
  %v898 = vsub.f32 %v896, %v897
  %v899 = vand.u32 %v898, 4294901760
  %900 = vmatpush.msra.mxu0 %v899
  %v901 = vand.u32 %v65, 4294901760
  %v902 = vsub.f32 %v65, %v901
  %v903 = vand.u32 %v902, 4294901760
  %v904 = vsub.f32 %v902, %v903
  %v905 = vand.u32 %v904, 4294901760
  %906 = vmatpush.msra.mxu0 %v905
  %v907 = vand.u32 %v64, 4294901760
  %v908 = vsub.f32 %v64, %v907
  %v909 = vand.u32 %v908, 4294901760
  %v910 = vsub.f32 %v908, %v909
  %v911 = vand.u32 %v910, 4294901760
  %912 = vmatpush.msra.mxu0 %v911
  %v913 = vand.u32 %v63, 4294901760
  %v914 = vsub.f32 %v63, %v913
  %v915 = vand.u32 %v914, 4294901760
  %v916 = vsub.f32 %v914, %v915
  %v917 = vand.u32 %v916, 4294901760
  %918 = vmatpush.msra.mxu0 %v917
  %v919 = vand.u32 %v62, 4294901760
  %v920 = vsub.f32 %v62, %v919
  %v921 = vand.u32 %v920, 4294901760
  %v922 = vsub.f32 %v920, %v921
  %v923 = vand.u32 %v922, 4294901760
  %924 = vmatpush.msra.mxu0 %v923
  %v925 = vand.u32 %v61, 4294901760
  %v926 = vsub.f32 %v61, %v925
  %v927 = vand.u32 %v926, 4294901760
  %v928 = vsub.f32 %v926, %v927
  %v929 = vand.u32 %v928, 4294901760
  %930 = vmatpush.msra.mxu0 %v929
  %v931 = vand.u32 %v60, 4294901760
  %v932 = vsub.f32 %v60, %v931
  %v933 = vand.u32 %v932, 4294901760
  %v934 = vsub.f32 %v932, %v933
  %v935 = vand.u32 %v934, 4294901760
  %936 = vmatpush.msra.mxu0 %v935
  %v937 = vand.u32 %v59, 4294901760
  %v938 = vsub.f32 %v59, %v937
  %v939 = vand.u32 %v938, 4294901760
  %v940 = vsub.f32 %v938, %v939
  %v941 = vand.u32 %v940, 4294901760
  %942 = vmatpush.msra.mxu0 %v941
  %v943 = vand.u32 %v58, 4294901760
  %v944 = vsub.f32 %v58, %v943
  %v945 = vand.u32 %v944, 4294901760
  %v946 = vsub.f32 %v944, %v945
  %v947 = vand.u32 %v946, 4294901760
  %948 = vmatpush.msra.mxu0 %v947
  %v949 = vand.u32 %v57, 4294901760
  %v950 = vsub.f32 %v57, %v949
  %v951 = vand.u32 %v950, 4294901760
  %v952 = vsub.f32 %v950, %v951
  %v953 = vand.u32 %v952, 4294901760
  %954 = vmatpush.msra.mxu0 %v953
  %v955 = vand.u32 %v56, 4294901760
  %v956 = vsub.f32 %v56, %v955
  %v957 = vand.u32 %v956, 4294901760
  %v958 = vsub.f32 %v956, %v957
  %v959 = vand.u32 %v958, 4294901760
  %960 = vmatpush.msra.mxu0 %v959
  %v961 = vand.u32 %v55, 4294901760
  %v962 = vsub.f32 %v55, %v961
  %v963 = vand.u32 %v962, 4294901760
  %v964 = vsub.f32 %v962, %v963
  %v965 = vand.u32 %v964, 4294901760
  %966 = vmatpush.msra.mxu0 %v965
  %v967 = vand.u32 %v54, 4294901760
  %v968 = vsub.f32 %v54, %v967
  %v969 = vand.u32 %v968, 4294901760
  %v970 = vsub.f32 %v968, %v969
  %v971 = vand.u32 %v970, 4294901760
  %972 = vmatpush.msra.mxu0 %v971
  %v973 = vand.u32 %v16, 4294901760
  %974 = vmatmul.f32.gmra.mxu0 %v973
  %v975 = vpop.f32.mrf.mxu0
  %v976 = vadd.f32 %v875, %v975
  %977 = vdwg.mxu0
  %v978 = vand.u32 %v69, 4294901760
  %v979 = vsub.f32 %v69, %v978
  %980 = vmatpush.msra.mxu0 %v979
  %v981 = vand.u32 %v68, 4294901760
  %v982 = vsub.f32 %v68, %v981
  %983 = vmatpush.msra.mxu0 %v982
  %v984 = vand.u32 %v67, 4294901760
  %v985 = vsub.f32 %v67, %v984
  %986 = vmatpush.msra.mxu0 %v985
  %v987 = vand.u32 %v66, 4294901760
  %v988 = vsub.f32 %v66, %v987
  %989 = vmatpush.msra.mxu0 %v988
  %v990 = vand.u32 %v65, 4294901760
  %v991 = vsub.f32 %v65, %v990
  %992 = vmatpush.msra.mxu0 %v991
  %v993 = vand.u32 %v64, 4294901760
  %v994 = vsub.f32 %v64, %v993
  %995 = vmatpush.msra.mxu0 %v994
  %v996 = vand.u32 %v63, 4294901760
  %v997 = vsub.f32 %v63, %v996
  %998 = vmatpush.msra.mxu0 %v997
  %v999 = vand.u32 %v62, 4294901760
  %v1000 = vsub.f32 %v62, %v999
  %1001 = vmatpush.msra.mxu0 %v1000
  %v1002 = vand.u32 %v61, 4294901760
  %v1003 = vsub.f32 %v61, %v1002
  %1004 = vmatpush.msra.mxu0 %v1003
  %v1005 = vand.u32 %v60, 4294901760
  %v1006 = vsub.f32 %v60, %v1005
  %1007 = vmatpush.msra.mxu0 %v1006
  %v1008 = vand.u32 %v59, 4294901760
  %v1009 = vsub.f32 %v59, %v1008
  %1010 = vmatpush.msra.mxu0 %v1009
  %v1011 = vand.u32 %v58, 4294901760
  %v1012 = vsub.f32 %v58, %v1011
  %1013 = vmatpush.msra.mxu0 %v1012
  %v1014 = vand.u32 %v57, 4294901760
  %v1015 = vsub.f32 %v57, %v1014
  %1016 = vmatpush.msra.mxu0 %v1015
  %v1017 = vand.u32 %v56, 4294901760
  %v1018 = vsub.f32 %v56, %v1017
  %1019 = vmatpush.msra.mxu0 %v1018
  %v1020 = vand.u32 %v55, 4294901760
  %v1021 = vsub.f32 %v55, %v1020
  %1022 = vmatpush.msra.mxu0 %v1021
  %v1023 = vand.u32 %v54, 4294901760
  %v1024 = vsub.f32 %v54, %v1023
  %1025 = vmatpush.msra.mxu0 %v1024
  %v1026 = vand.u32 %v16, 4294901760
  %v1027 = vsub.f32 %v16, %v1026
  %1028 = vmatmul.f32.gmra.mxu0 %v1027
  %v1029 = vpop.f32.mrf.mxu0
  %v1030 = vadd.f32 %v976, %v1029
  %1031 = vdwg.mxu0
  %v1032 = vand.u32 %v69, 4294901760
  %1033 = vmatpush.msra.mxu0 %v1032
  %v1034 = vand.u32 %v68, 4294901760
  %1035 = vmatpush.msra.mxu0 %v1034
  %v1036 = vand.u32 %v67, 4294901760
  %1037 = vmatpush.msra.mxu0 %v1036
  %v1038 = vand.u32 %v66, 4294901760
  %1039 = vmatpush.msra.mxu0 %v1038
  %v1040 = vand.u32 %v65, 4294901760
  %1041 = vmatpush.msra.mxu0 %v1040
  %v1042 = vand.u32 %v64, 4294901760
  %1043 = vmatpush.msra.mxu0 %v1042
  %v1044 = vand.u32 %v63, 4294901760
  %1045 = vmatpush.msra.mxu0 %v1044
  %v1046 = vand.u32 %v62, 4294901760
  %1047 = vmatpush.msra.mxu0 %v1046
  %v1048 = vand.u32 %v61, 4294901760
  %1049 = vmatpush.msra.mxu0 %v1048
  %v1050 = vand.u32 %v60, 4294901760
  %1051 = vmatpush.msra.mxu0 %v1050
  %v1052 = vand.u32 %v59, 4294901760
  %1053 = vmatpush.msra.mxu0 %v1052
  %v1054 = vand.u32 %v58, 4294901760
  %1055 = vmatpush.msra.mxu0 %v1054
  %v1056 = vand.u32 %v57, 4294901760
  %1057 = vmatpush.msra.mxu0 %v1056
  %v1058 = vand.u32 %v56, 4294901760
  %1059 = vmatpush.msra.mxu0 %v1058
  %v1060 = vand.u32 %v55, 4294901760
  %1061 = vmatpush.msra.mxu0 %v1060
  %v1062 = vand.u32 %v54, 4294901760
  %1063 = vmatpush.msra.mxu0 %v1062
  %v1064 = vand.u32 %v16, 4294901760
  %v1065 = vsub.f32 %v16, %v1064
  %v1066 = vand.u32 %v1065, 4294901760
  %1067 = vmatmul.f32.gmra.mxu0 %v1066
  %v1068 = vpop.f32.mrf.mxu0
  %v1069 = vadd.f32 %v1030, %v1068
  %1070 = vdwg.mxu0
  %v1071 = vand.u32 %v69, 4294901760
  %v1072 = vsub.f32 %v69, %v1071
  %v1073 = vand.u32 %v1072, 4294901760
  %1074 = vmatpush.msra.mxu0 %v1073
  %v1075 = vand.u32 %v68, 4294901760
  %v1076 = vsub.f32 %v68, %v1075
  %v1077 = vand.u32 %v1076, 4294901760
  %1078 = vmatpush.msra.mxu0 %v1077
  %v1079 = vand.u32 %v67, 4294901760
  %v1080 = vsub.f32 %v67, %v1079
  %v1081 = vand.u32 %v1080, 4294901760
  %1082 = vmatpush.msra.mxu0 %v1081
  %v1083 = vand.u32 %v66, 4294901760
  %v1084 = vsub.f32 %v66, %v1083
  %v1085 = vand.u32 %v1084, 4294901760
  %1086 = vmatpush.msra.mxu0 %v1085
  %v1087 = vand.u32 %v65, 4294901760
  %v1088 = vsub.f32 %v65, %v1087
  %v1089 = vand.u32 %v1088, 4294901760
  %1090 = vmatpush.msra.mxu0 %v1089
  %v1091 = vand.u32 %v64, 4294901760
  %v1092 = vsub.f32 %v64, %v1091
  %v1093 = vand.u32 %v1092, 4294901760
  %1094 = vmatpush.msra.mxu0 %v1093
  %v1095 = vand.u32 %v63, 4294901760
  %v1096 = vsub.f32 %v63, %v1095
  %v1097 = vand.u32 %v1096, 4294901760
  %1098 = vmatpush.msra.mxu0 %v1097
  %v1099 = vand.u32 %v62, 4294901760
  %v1100 = vsub.f32 %v62, %v1099
  %v1101 = vand.u32 %v1100, 4294901760
  %1102 = vmatpush.msra.mxu0 %v1101
  %v1103 = vand.u32 %v61, 4294901760
  %v1104 = vsub.f32 %v61, %v1103
  %v1105 = vand.u32 %v1104, 4294901760
  %1106 = vmatpush.msra.mxu0 %v1105
  %v1107 = vand.u32 %v60, 4294901760
  %v1108 = vsub.f32 %v60, %v1107
  %v1109 = vand.u32 %v1108, 4294901760
  %1110 = vmatpush.msra.mxu0 %v1109
  %v1111 = vand.u32 %v59, 4294901760
  %v1112 = vsub.f32 %v59, %v1111
  %v1113 = vand.u32 %v1112, 4294901760
  %1114 = vmatpush.msra.mxu0 %v1113
  %v1115 = vand.u32 %v58, 4294901760
  %v1116 = vsub.f32 %v58, %v1115
  %v1117 = vand.u32 %v1116, 4294901760
  %1118 = vmatpush.msra.mxu0 %v1117
  %v1119 = vand.u32 %v57, 4294901760
  %v1120 = vsub.f32 %v57, %v1119
  %v1121 = vand.u32 %v1120, 4294901760
  %1122 = vmatpush.msra.mxu0 %v1121
  %v1123 = vand.u32 %v56, 4294901760
  %v1124 = vsub.f32 %v56, %v1123
  %v1125 = vand.u32 %v1124, 4294901760
  %1126 = vmatpush.msra.mxu0 %v1125
  %v1127 = vand.u32 %v55, 4294901760
  %v1128 = vsub.f32 %v55, %v1127
  %v1129 = vand.u32 %v1128, 4294901760
  %1130 = vmatpush.msra.mxu0 %v1129
  %v1131 = vand.u32 %v54, 4294901760
  %v1132 = vsub.f32 %v54, %v1131
  %v1133 = vand.u32 %v1132, 4294901760
  %1134 = vmatpush.msra.mxu0 %v1133
  %v1135 = vand.u32 %v16, 4294901760
  %1136 = vmatmul.f32.gmra.mxu0 %v1135
  %v1137 = vpop.f32.mrf.mxu0
  %v1138 = vadd.f32 %v1069, %v1137
  %1139 = vdwg.mxu0
  %v1140 = vand.u32 %v69, 4294901760
  %1141 = vmatpush.msra.mxu0 %v1140
  %v1142 = vand.u32 %v68, 4294901760
  %1143 = vmatpush.msra.mxu0 %v1142
  %v1144 = vand.u32 %v67, 4294901760
  %1145 = vmatpush.msra.mxu0 %v1144
  %v1146 = vand.u32 %v66, 4294901760
  %1147 = vmatpush.msra.mxu0 %v1146
  %v1148 = vand.u32 %v65, 4294901760
  %1149 = vmatpush.msra.mxu0 %v1148
  %v1150 = vand.u32 %v64, 4294901760
  %1151 = vmatpush.msra.mxu0 %v1150
  %v1152 = vand.u32 %v63, 4294901760
  %1153 = vmatpush.msra.mxu0 %v1152
  %v1154 = vand.u32 %v62, 4294901760
  %1155 = vmatpush.msra.mxu0 %v1154
  %v1156 = vand.u32 %v61, 4294901760
  %1157 = vmatpush.msra.mxu0 %v1156
  %v1158 = vand.u32 %v60, 4294901760
  %1159 = vmatpush.msra.mxu0 %v1158
  %v1160 = vand.u32 %v59, 4294901760
  %1161 = vmatpush.msra.mxu0 %v1160
  %v1162 = vand.u32 %v58, 4294901760
  %1163 = vmatpush.msra.mxu0 %v1162
  %v1164 = vand.u32 %v57, 4294901760
  %1165 = vmatpush.msra.mxu0 %v1164
  %v1166 = vand.u32 %v56, 4294901760
  %1167 = vmatpush.msra.mxu0 %v1166
  %v1168 = vand.u32 %v55, 4294901760
  %1169 = vmatpush.msra.mxu0 %v1168
  %v1170 = vand.u32 %v54, 4294901760
  %1171 = vmatpush.msra.mxu0 %v1170
  %v1172 = vand.u32 %v16, 4294901760
  %1173 = vmatmul.f32.gmra.mxu0 %v1172
  %v1174 = vpop.f32.mrf.mxu0
  %v1175 = vadd.f32 %v1138, %v1174
  %1176 = vdwg.mxu0
  %v1177 = vand.u32 %v85, 4294901760
  %1178 = vmatpush.msra.mxu0 %v1177
  %v1179 = vand.u32 %v84, 4294901760
  %1180 = vmatpush.msra.mxu0 %v1179
  %v1181 = vand.u32 %v83, 4294901760
  %1182 = vmatpush.msra.mxu0 %v1181
  %v1183 = vand.u32 %v82, 4294901760
  %1184 = vmatpush.msra.mxu0 %v1183
  %v1185 = vand.u32 %v81, 4294901760
  %1186 = vmatpush.msra.mxu0 %v1185
  %v1187 = vand.u32 %v80, 4294901760
  %1188 = vmatpush.msra.mxu0 %v1187
  %v1189 = vand.u32 %v79, 4294901760
  %1190 = vmatpush.msra.mxu0 %v1189
  %v1191 = vand.u32 %v78, 4294901760
  %1192 = vmatpush.msra.mxu0 %v1191
  %v1193 = vand.u32 %v77, 4294901760
  %1194 = vmatpush.msra.mxu0 %v1193
  %v1195 = vand.u32 %v76, 4294901760
  %1196 = vmatpush.msra.mxu0 %v1195
  %v1197 = vand.u32 %v75, 4294901760
  %1198 = vmatpush.msra.mxu0 %v1197
  %v1199 = vand.u32 %v74, 4294901760
  %1200 = vmatpush.msra.mxu0 %v1199
  %v1201 = vand.u32 %v73, 4294901760
  %1202 = vmatpush.msra.mxu0 %v1201
  %v1203 = vand.u32 %v72, 4294901760
  %1204 = vmatpush.msra.mxu0 %v1203
  %v1205 = vand.u32 %v71, 4294901760
  %1206 = vmatpush.msra.mxu0 %v1205
  %v1207 = vand.u32 %v70, 4294901760
  %1208 = vmatpush.msra.mxu0 %v1207
  %v1209 = vand.u32 %v17, 4294901760
  %v1210 = vsub.f32 %v17, %v1209
  %v1211 = vand.u32 %v1210, 4294901760
  %v1212 = vsub.f32 %v1210, %v1211
  %v1213 = vand.u32 %v1212, 4294901760
  %1214 = vmatmul.f32.gmra.mxu0 %v1213
  %v1215 = vpop.f32.mrf.mxu0
  %v1216 = vadd.f32 %v1175, %v1215
  %1217 = vdwg.mxu0
  %v1218 = vand.u32 %v85, 4294901760
  %v1219 = vsub.f32 %v85, %v1218
  %v1220 = vand.u32 %v1219, 4294901760
  %v1221 = vsub.f32 %v1219, %v1220
  %v1222 = vand.u32 %v1221, 4294901760
  %1223 = vmatpush.msra.mxu0 %v1222
  %v1224 = vand.u32 %v84, 4294901760
  %v1225 = vsub.f32 %v84, %v1224
  %v1226 = vand.u32 %v1225, 4294901760
  %v1227 = vsub.f32 %v1225, %v1226
  %v1228 = vand.u32 %v1227, 4294901760
  %1229 = vmatpush.msra.mxu0 %v1228
  %v1230 = vand.u32 %v83, 4294901760
  %v1231 = vsub.f32 %v83, %v1230
  %v1232 = vand.u32 %v1231, 4294901760
  %v1233 = vsub.f32 %v1231, %v1232
  %v1234 = vand.u32 %v1233, 4294901760
  %1235 = vmatpush.msra.mxu0 %v1234
  %v1236 = vand.u32 %v82, 4294901760
  %v1237 = vsub.f32 %v82, %v1236
  %v1238 = vand.u32 %v1237, 4294901760
  %v1239 = vsub.f32 %v1237, %v1238
  %v1240 = vand.u32 %v1239, 4294901760
  %1241 = vmatpush.msra.mxu0 %v1240
  %v1242 = vand.u32 %v81, 4294901760
  %v1243 = vsub.f32 %v81, %v1242
  %v1244 = vand.u32 %v1243, 4294901760
  %v1245 = vsub.f32 %v1243, %v1244
  %v1246 = vand.u32 %v1245, 4294901760
  %1247 = vmatpush.msra.mxu0 %v1246
  %v1248 = vand.u32 %v80, 4294901760
  %v1249 = vsub.f32 %v80, %v1248
  %v1250 = vand.u32 %v1249, 4294901760
  %v1251 = vsub.f32 %v1249, %v1250
  %v1252 = vand.u32 %v1251, 4294901760
  %1253 = vmatpush.msra.mxu0 %v1252
  %v1254 = vand.u32 %v79, 4294901760
  %v1255 = vsub.f32 %v79, %v1254
  %v1256 = vand.u32 %v1255, 4294901760
  %v1257 = vsub.f32 %v1255, %v1256
  %v1258 = vand.u32 %v1257, 4294901760
  %1259 = vmatpush.msra.mxu0 %v1258
  %v1260 = vand.u32 %v78, 4294901760
  %v1261 = vsub.f32 %v78, %v1260
  %v1262 = vand.u32 %v1261, 4294901760
  %v1263 = vsub.f32 %v1261, %v1262
  %v1264 = vand.u32 %v1263, 4294901760
  %1265 = vmatpush.msra.mxu0 %v1264
  %v1266 = vand.u32 %v77, 4294901760
  %v1267 = vsub.f32 %v77, %v1266
  %v1268 = vand.u32 %v1267, 4294901760
  %v1269 = vsub.f32 %v1267, %v1268
  %v1270 = vand.u32 %v1269, 4294901760
  %1271 = vmatpush.msra.mxu0 %v1270
  %v1272 = vand.u32 %v76, 4294901760
  %v1273 = vsub.f32 %v76, %v1272
  %v1274 = vand.u32 %v1273, 4294901760
  %v1275 = vsub.f32 %v1273, %v1274
  %v1276 = vand.u32 %v1275, 4294901760
  %1277 = vmatpush.msra.mxu0 %v1276
  %v1278 = vand.u32 %v75, 4294901760
  %v1279 = vsub.f32 %v75, %v1278
  %v1280 = vand.u32 %v1279, 4294901760
  %v1281 = vsub.f32 %v1279, %v1280
  %v1282 = vand.u32 %v1281, 4294901760
  %1283 = vmatpush.msra.mxu0 %v1282
  %v1284 = vand.u32 %v74, 4294901760
  %v1285 = vsub.f32 %v74, %v1284
  %v1286 = vand.u32 %v1285, 4294901760
  %v1287 = vsub.f32 %v1285, %v1286
  %v1288 = vand.u32 %v1287, 4294901760
  %1289 = vmatpush.msra.mxu0 %v1288
  %v1290 = vand.u32 %v73, 4294901760
  %v1291 = vsub.f32 %v73, %v1290
  %v1292 = vand.u32 %v1291, 4294901760
  %v1293 = vsub.f32 %v1291, %v1292
  %v1294 = vand.u32 %v1293, 4294901760
  %1295 = vmatpush.msra.mxu0 %v1294
  %v1296 = vand.u32 %v72, 4294901760
  %v1297 = vsub.f32 %v72, %v1296
  %v1298 = vand.u32 %v1297, 4294901760
  %v1299 = vsub.f32 %v1297, %v1298
  %v1300 = vand.u32 %v1299, 4294901760
  %1301 = vmatpush.msra.mxu0 %v1300
  %v1302 = vand.u32 %v71, 4294901760
  %v1303 = vsub.f32 %v71, %v1302
  %v1304 = vand.u32 %v1303, 4294901760
  %v1305 = vsub.f32 %v1303, %v1304
  %v1306 = vand.u32 %v1305, 4294901760
  %1307 = vmatpush.msra.mxu0 %v1306
  %v1308 = vand.u32 %v70, 4294901760
  %v1309 = vsub.f32 %v70, %v1308
  %v1310 = vand.u32 %v1309, 4294901760
  %v1311 = vsub.f32 %v1309, %v1310
  %v1312 = vand.u32 %v1311, 4294901760
  %1313 = vmatpush.msra.mxu0 %v1312
  %v1314 = vand.u32 %v17, 4294901760
  %1315 = vmatmul.f32.gmra.mxu0 %v1314
  %v1316 = vpop.f32.mrf.mxu0
  %v1317 = vadd.f32 %v1216, %v1316
  %1318 = vdwg.mxu0
  %v1319 = vand.u32 %v85, 4294901760
  %v1320 = vsub.f32 %v85, %v1319
  %1321 = vmatpush.msra.mxu0 %v1320
  %v1322 = vand.u32 %v84, 4294901760
  %v1323 = vsub.f32 %v84, %v1322
  %1324 = vmatpush.msra.mxu0 %v1323
  %v1325 = vand.u32 %v83, 4294901760
  %v1326 = vsub.f32 %v83, %v1325
  %1327 = vmatpush.msra.mxu0 %v1326
  %v1328 = vand.u32 %v82, 4294901760
  %v1329 = vsub.f32 %v82, %v1328
  %1330 = vmatpush.msra.mxu0 %v1329
  %v1331 = vand.u32 %v81, 4294901760
  %v1332 = vsub.f32 %v81, %v1331
  %1333 = vmatpush.msra.mxu0 %v1332
  %v1334 = vand.u32 %v80, 4294901760
  %v1335 = vsub.f32 %v80, %v1334
  %1336 = vmatpush.msra.mxu0 %v1335
  %v1337 = vand.u32 %v79, 4294901760
  %v1338 = vsub.f32 %v79, %v1337
  %1339 = vmatpush.msra.mxu0 %v1338
  %v1340 = vand.u32 %v78, 4294901760
  %v1341 = vsub.f32 %v78, %v1340
  %1342 = vmatpush.msra.mxu0 %v1341
  %v1343 = vand.u32 %v77, 4294901760
  %v1344 = vsub.f32 %v77, %v1343
  %1345 = vmatpush.msra.mxu0 %v1344
  %v1346 = vand.u32 %v76, 4294901760
  %v1347 = vsub.f32 %v76, %v1346
  %1348 = vmatpush.msra.mxu0 %v1347
  %v1349 = vand.u32 %v75, 4294901760
  %v1350 = vsub.f32 %v75, %v1349
  %1351 = vmatpush.msra.mxu0 %v1350
  %v1352 = vand.u32 %v74, 4294901760
  %v1353 = vsub.f32 %v74, %v1352
  %1354 = vmatpush.msra.mxu0 %v1353
  %v1355 = vand.u32 %v73, 4294901760
  %v1356 = vsub.f32 %v73, %v1355
  %1357 = vmatpush.msra.mxu0 %v1356
  %v1358 = vand.u32 %v72, 4294901760
  %v1359 = vsub.f32 %v72, %v1358
  %1360 = vmatpush.msra.mxu0 %v1359
  %v1361 = vand.u32 %v71, 4294901760
  %v1362 = vsub.f32 %v71, %v1361
  %1363 = vmatpush.msra.mxu0 %v1362
  %v1364 = vand.u32 %v70, 4294901760
  %v1365 = vsub.f32 %v70, %v1364
  %1366 = vmatpush.msra.mxu0 %v1365
  %v1367 = vand.u32 %v17, 4294901760
  %v1368 = vsub.f32 %v17, %v1367
  %1369 = vmatmul.f32.gmra.mxu0 %v1368
  %v1370 = vpop.f32.mrf.mxu0
  %v1371 = vadd.f32 %v1317, %v1370
  %1372 = vdwg.mxu0
  %v1373 = vand.u32 %v85, 4294901760
  %1374 = vmatpush.msra.mxu0 %v1373
  %v1375 = vand.u32 %v84, 4294901760
  %1376 = vmatpush.msra.mxu0 %v1375
  %v1377 = vand.u32 %v83, 4294901760
  %1378 = vmatpush.msra.mxu0 %v1377
  %v1379 = vand.u32 %v82, 4294901760
  %1380 = vmatpush.msra.mxu0 %v1379
  %v1381 = vand.u32 %v81, 4294901760
  %1382 = vmatpush.msra.mxu0 %v1381
  %v1383 = vand.u32 %v80, 4294901760
  %1384 = vmatpush.msra.mxu0 %v1383
  %v1385 = vand.u32 %v79, 4294901760
  %1386 = vmatpush.msra.mxu0 %v1385
  %v1387 = vand.u32 %v78, 4294901760
  %1388 = vmatpush.msra.mxu0 %v1387
  %v1389 = vand.u32 %v77, 4294901760
  %1390 = vmatpush.msra.mxu0 %v1389
  %v1391 = vand.u32 %v76, 4294901760
  %1392 = vmatpush.msra.mxu0 %v1391
  %v1393 = vand.u32 %v75, 4294901760
  %1394 = vmatpush.msra.mxu0 %v1393
  %v1395 = vand.u32 %v74, 4294901760
  %1396 = vmatpush.msra.mxu0 %v1395
  %v1397 = vand.u32 %v73, 4294901760
  %1398 = vmatpush.msra.mxu0 %v1397
  %v1399 = vand.u32 %v72, 4294901760
  %1400 = vmatpush.msra.mxu0 %v1399
  %v1401 = vand.u32 %v71, 4294901760
  %1402 = vmatpush.msra.mxu0 %v1401
  %v1403 = vand.u32 %v70, 4294901760
  %1404 = vmatpush.msra.mxu0 %v1403
  %v1405 = vand.u32 %v17, 4294901760
  %v1406 = vsub.f32 %v17, %v1405
  %v1407 = vand.u32 %v1406, 4294901760
  %1408 = vmatmul.f32.gmra.mxu0 %v1407
  %v1409 = vpop.f32.mrf.mxu0
  %v1410 = vadd.f32 %v1371, %v1409
  %1411 = vdwg.mxu0
  %v1412 = vand.u32 %v85, 4294901760
  %v1413 = vsub.f32 %v85, %v1412
  %v1414 = vand.u32 %v1413, 4294901760
  %1415 = vmatpush.msra.mxu0 %v1414
  %v1416 = vand.u32 %v84, 4294901760
  %v1417 = vsub.f32 %v84, %v1416
  %v1418 = vand.u32 %v1417, 4294901760
  %1419 = vmatpush.msra.mxu0 %v1418
  %v1420 = vand.u32 %v83, 4294901760
  %v1421 = vsub.f32 %v83, %v1420
  %v1422 = vand.u32 %v1421, 4294901760
  %1423 = vmatpush.msra.mxu0 %v1422
  %v1424 = vand.u32 %v82, 4294901760
  %v1425 = vsub.f32 %v82, %v1424
  %v1426 = vand.u32 %v1425, 4294901760
  %1427 = vmatpush.msra.mxu0 %v1426
  %v1428 = vand.u32 %v81, 4294901760
  %v1429 = vsub.f32 %v81, %v1428
  %v1430 = vand.u32 %v1429, 4294901760
  %1431 = vmatpush.msra.mxu0 %v1430
  %v1432 = vand.u32 %v80, 4294901760
  %v1433 = vsub.f32 %v80, %v1432
  %v1434 = vand.u32 %v1433, 4294901760
  %1435 = vmatpush.msra.mxu0 %v1434
  %v1436 = vand.u32 %v79, 4294901760
  %v1437 = vsub.f32 %v79, %v1436
  %v1438 = vand.u32 %v1437, 4294901760
  %1439 = vmatpush.msra.mxu0 %v1438
  %v1440 = vand.u32 %v78, 4294901760
  %v1441 = vsub.f32 %v78, %v1440
  %v1442 = vand.u32 %v1441, 4294901760
  %1443 = vmatpush.msra.mxu0 %v1442
  %v1444 = vand.u32 %v77, 4294901760
  %v1445 = vsub.f32 %v77, %v1444
  %v1446 = vand.u32 %v1445, 4294901760
  %1447 = vmatpush.msra.mxu0 %v1446
  %v1448 = vand.u32 %v76, 4294901760
  %v1449 = vsub.f32 %v76, %v1448
  %v1450 = vand.u32 %v1449, 4294901760
  %1451 = vmatpush.msra.mxu0 %v1450
  %v1452 = vand.u32 %v75, 4294901760
  %v1453 = vsub.f32 %v75, %v1452
  %v1454 = vand.u32 %v1453, 4294901760
  %1455 = vmatpush.msra.mxu0 %v1454
  %v1456 = vand.u32 %v74, 4294901760
  %v1457 = vsub.f32 %v74, %v1456
  %v1458 = vand.u32 %v1457, 4294901760
  %1459 = vmatpush.msra.mxu0 %v1458
  %v1460 = vand.u32 %v73, 4294901760
  %v1461 = vsub.f32 %v73, %v1460
  %v1462 = vand.u32 %v1461, 4294901760
  %1463 = vmatpush.msra.mxu0 %v1462
  %v1464 = vand.u32 %v72, 4294901760
  %v1465 = vsub.f32 %v72, %v1464
  %v1466 = vand.u32 %v1465, 4294901760
  %1467 = vmatpush.msra.mxu0 %v1466
  %v1468 = vand.u32 %v71, 4294901760
  %v1469 = vsub.f32 %v71, %v1468
  %v1470 = vand.u32 %v1469, 4294901760
  %1471 = vmatpush.msra.mxu0 %v1470
  %v1472 = vand.u32 %v70, 4294901760
  %v1473 = vsub.f32 %v70, %v1472
  %v1474 = vand.u32 %v1473, 4294901760
  %1475 = vmatpush.msra.mxu0 %v1474
  %v1476 = vand.u32 %v17, 4294901760
  %1477 = vmatmul.f32.gmra.mxu0 %v1476
  %v1478 = vpop.f32.mrf.mxu0
  %v1479 = vadd.f32 %v1410, %v1478
  %1480 = vdwg.mxu0
  %v1481 = vand.u32 %v85, 4294901760
  %1482 = vmatpush.msra.mxu0 %v1481
  %v1483 = vand.u32 %v84, 4294901760
  %1484 = vmatpush.msra.mxu0 %v1483
  %v1485 = vand.u32 %v83, 4294901760
  %1486 = vmatpush.msra.mxu0 %v1485
  %v1487 = vand.u32 %v82, 4294901760
  %1488 = vmatpush.msra.mxu0 %v1487
  %v1489 = vand.u32 %v81, 4294901760
  %1490 = vmatpush.msra.mxu0 %v1489
  %v1491 = vand.u32 %v80, 4294901760
  %1492 = vmatpush.msra.mxu0 %v1491
  %v1493 = vand.u32 %v79, 4294901760
  %1494 = vmatpush.msra.mxu0 %v1493
  %v1495 = vand.u32 %v78, 4294901760
  %1496 = vmatpush.msra.mxu0 %v1495
  %v1497 = vand.u32 %v77, 4294901760
  %1498 = vmatpush.msra.mxu0 %v1497
  %v1499 = vand.u32 %v76, 4294901760
  %1500 = vmatpush.msra.mxu0 %v1499
  %v1501 = vand.u32 %v75, 4294901760
  %1502 = vmatpush.msra.mxu0 %v1501
  %v1503 = vand.u32 %v74, 4294901760
  %1504 = vmatpush.msra.mxu0 %v1503
  %v1505 = vand.u32 %v73, 4294901760
  %1506 = vmatpush.msra.mxu0 %v1505
  %v1507 = vand.u32 %v72, 4294901760
  %1508 = vmatpush.msra.mxu0 %v1507
  %v1509 = vand.u32 %v71, 4294901760
  %1510 = vmatpush.msra.mxu0 %v1509
  %v1511 = vand.u32 %v70, 4294901760
  %1512 = vmatpush.msra.mxu0 %v1511
  %v1513 = vand.u32 %v17, 4294901760
  %1514 = vmatmul.f32.gmra.mxu0 %v1513
  %v1515 = vpop.f32.mrf.mxu0
  %v1516 = vadd.f32 %v1479, %v1515
  %1517 = vdwg.mxu0
  %v1518 = vand.u32 %v101, 4294901760
  %1519 = vmatpush.msra.mxu0 %v1518
  %v1520 = vand.u32 %v100, 4294901760
  %1521 = vmatpush.msra.mxu0 %v1520
  %v1522 = vand.u32 %v99, 4294901760
  %1523 = vmatpush.msra.mxu0 %v1522
  %v1524 = vand.u32 %v98, 4294901760
  %1525 = vmatpush.msra.mxu0 %v1524
  %v1526 = vand.u32 %v97, 4294901760
  %1527 = vmatpush.msra.mxu0 %v1526
  %v1528 = vand.u32 %v96, 4294901760
  %1529 = vmatpush.msra.mxu0 %v1528
  %v1530 = vand.u32 %v95, 4294901760
  %1531 = vmatpush.msra.mxu0 %v1530
  %v1532 = vand.u32 %v94, 4294901760
  %1533 = vmatpush.msra.mxu0 %v1532
  %v1534 = vand.u32 %v93, 4294901760
  %1535 = vmatpush.msra.mxu0 %v1534
  %v1536 = vand.u32 %v92, 4294901760
  %1537 = vmatpush.msra.mxu0 %v1536
  %v1538 = vand.u32 %v91, 4294901760
  %1539 = vmatpush.msra.mxu0 %v1538
  %v1540 = vand.u32 %v90, 4294901760
  %1541 = vmatpush.msra.mxu0 %v1540
  %v1542 = vand.u32 %v89, 4294901760
  %1543 = vmatpush.msra.mxu0 %v1542
  %v1544 = vand.u32 %v88, 4294901760
  %1545 = vmatpush.msra.mxu0 %v1544
  %v1546 = vand.u32 %v87, 4294901760
  %1547 = vmatpush.msra.mxu0 %v1546
  %v1548 = vand.u32 %v86, 4294901760
  %1549 = vmatpush.msra.mxu0 %v1548
  %v1550 = vand.u32 %v18, 4294901760
  %v1551 = vsub.f32 %v18, %v1550
  %v1552 = vand.u32 %v1551, 4294901760
  %v1553 = vsub.f32 %v1551, %v1552
  %v1554 = vand.u32 %v1553, 4294901760
  %1555 = vmatmul.f32.gmra.mxu0 %v1554
  %v1556 = vpop.f32.mrf.mxu0
  %v1557 = vadd.f32 %v1516, %v1556
  %1558 = vdwg.mxu0
  %v1559 = vand.u32 %v101, 4294901760
  %v1560 = vsub.f32 %v101, %v1559
  %v1561 = vand.u32 %v1560, 4294901760
  %v1562 = vsub.f32 %v1560, %v1561
  %v1563 = vand.u32 %v1562, 4294901760
  %1564 = vmatpush.msra.mxu0 %v1563
  %v1565 = vand.u32 %v100, 4294901760
  %v1566 = vsub.f32 %v100, %v1565
  %v1567 = vand.u32 %v1566, 4294901760
  %v1568 = vsub.f32 %v1566, %v1567
  %v1569 = vand.u32 %v1568, 4294901760
  %1570 = vmatpush.msra.mxu0 %v1569
  %v1571 = vand.u32 %v99, 4294901760
  %v1572 = vsub.f32 %v99, %v1571
  %v1573 = vand.u32 %v1572, 4294901760
  %v1574 = vsub.f32 %v1572, %v1573
  %v1575 = vand.u32 %v1574, 4294901760
  %1576 = vmatpush.msra.mxu0 %v1575
  %v1577 = vand.u32 %v98, 4294901760
  %v1578 = vsub.f32 %v98, %v1577
  %v1579 = vand.u32 %v1578, 4294901760
  %v1580 = vsub.f32 %v1578, %v1579
  %v1581 = vand.u32 %v1580, 4294901760
  %1582 = vmatpush.msra.mxu0 %v1581
  %v1583 = vand.u32 %v97, 4294901760
  %v1584 = vsub.f32 %v97, %v1583
  %v1585 = vand.u32 %v1584, 4294901760
  %v1586 = vsub.f32 %v1584, %v1585
  %v1587 = vand.u32 %v1586, 4294901760
  %1588 = vmatpush.msra.mxu0 %v1587
  %v1589 = vand.u32 %v96, 4294901760
  %v1590 = vsub.f32 %v96, %v1589
  %v1591 = vand.u32 %v1590, 4294901760
  %v1592 = vsub.f32 %v1590, %v1591
  %v1593 = vand.u32 %v1592, 4294901760
  %1594 = vmatpush.msra.mxu0 %v1593
  %v1595 = vand.u32 %v95, 4294901760
  %v1596 = vsub.f32 %v95, %v1595
  %v1597 = vand.u32 %v1596, 4294901760
  %v1598 = vsub.f32 %v1596, %v1597
  %v1599 = vand.u32 %v1598, 4294901760
  %1600 = vmatpush.msra.mxu0 %v1599
  %v1601 = vand.u32 %v94, 4294901760
  %v1602 = vsub.f32 %v94, %v1601
  %v1603 = vand.u32 %v1602, 4294901760
  %v1604 = vsub.f32 %v1602, %v1603
  %v1605 = vand.u32 %v1604, 4294901760
  %1606 = vmatpush.msra.mxu0 %v1605
  %v1607 = vand.u32 %v93, 4294901760
  %v1608 = vsub.f32 %v93, %v1607
  %v1609 = vand.u32 %v1608, 4294901760
  %v1610 = vsub.f32 %v1608, %v1609
  %v1611 = vand.u32 %v1610, 4294901760
  %1612 = vmatpush.msra.mxu0 %v1611
  %v1613 = vand.u32 %v92, 4294901760
  %v1614 = vsub.f32 %v92, %v1613
  %v1615 = vand.u32 %v1614, 4294901760
  %v1616 = vsub.f32 %v1614, %v1615
  %v1617 = vand.u32 %v1616, 4294901760
  %1618 = vmatpush.msra.mxu0 %v1617
  %v1619 = vand.u32 %v91, 4294901760
  %v1620 = vsub.f32 %v91, %v1619
  %v1621 = vand.u32 %v1620, 4294901760
  %v1622 = vsub.f32 %v1620, %v1621
  %v1623 = vand.u32 %v1622, 4294901760
  %1624 = vmatpush.msra.mxu0 %v1623
  %v1625 = vand.u32 %v90, 4294901760
  %v1626 = vsub.f32 %v90, %v1625
  %v1627 = vand.u32 %v1626, 4294901760
  %v1628 = vsub.f32 %v1626, %v1627
  %v1629 = vand.u32 %v1628, 4294901760
  %1630 = vmatpush.msra.mxu0 %v1629
  %v1631 = vand.u32 %v89, 4294901760
  %v1632 = vsub.f32 %v89, %v1631
  %v1633 = vand.u32 %v1632, 4294901760
  %v1634 = vsub.f32 %v1632, %v1633
  %v1635 = vand.u32 %v1634, 4294901760
  %1636 = vmatpush.msra.mxu0 %v1635
  %v1637 = vand.u32 %v88, 4294901760
  %v1638 = vsub.f32 %v88, %v1637
  %v1639 = vand.u32 %v1638, 4294901760
  %v1640 = vsub.f32 %v1638, %v1639
  %v1641 = vand.u32 %v1640, 4294901760
  %1642 = vmatpush.msra.mxu0 %v1641
  %v1643 = vand.u32 %v87, 4294901760
  %v1644 = vsub.f32 %v87, %v1643
  %v1645 = vand.u32 %v1644, 4294901760
  %v1646 = vsub.f32 %v1644, %v1645
  %v1647 = vand.u32 %v1646, 4294901760
  %1648 = vmatpush.msra.mxu0 %v1647
  %v1649 = vand.u32 %v86, 4294901760
  %v1650 = vsub.f32 %v86, %v1649
  %v1651 = vand.u32 %v1650, 4294901760
  %v1652 = vsub.f32 %v1650, %v1651
  %v1653 = vand.u32 %v1652, 4294901760
  %1654 = vmatpush.msra.mxu0 %v1653
  %v1655 = vand.u32 %v18, 4294901760
  %1656 = vmatmul.f32.gmra.mxu0 %v1655
  %v1657 = vpop.f32.mrf.mxu0
  %v1658 = vadd.f32 %v1557, %v1657
  %1659 = vdwg.mxu0
  %v1660 = vand.u32 %v101, 4294901760
  %v1661 = vsub.f32 %v101, %v1660
  %1662 = vmatpush.msra.mxu0 %v1661
  %v1663 = vand.u32 %v100, 4294901760
  %v1664 = vsub.f32 %v100, %v1663
  %1665 = vmatpush.msra.mxu0 %v1664
  %v1666 = vand.u32 %v99, 4294901760
  %v1667 = vsub.f32 %v99, %v1666
  %1668 = vmatpush.msra.mxu0 %v1667
  %v1669 = vand.u32 %v98, 4294901760
  %v1670 = vsub.f32 %v98, %v1669
  %1671 = vmatpush.msra.mxu0 %v1670
  %v1672 = vand.u32 %v97, 4294901760
  %v1673 = vsub.f32 %v97, %v1672
  %1674 = vmatpush.msra.mxu0 %v1673
  %v1675 = vand.u32 %v96, 4294901760
  %v1676 = vsub.f32 %v96, %v1675
  %1677 = vmatpush.msra.mxu0 %v1676
  %v1678 = vand.u32 %v95, 4294901760
  %v1679 = vsub.f32 %v95, %v1678
  %1680 = vmatpush.msra.mxu0 %v1679
  %v1681 = vand.u32 %v94, 4294901760
  %v1682 = vsub.f32 %v94, %v1681
  %1683 = vmatpush.msra.mxu0 %v1682
  %v1684 = vand.u32 %v93, 4294901760
  %v1685 = vsub.f32 %v93, %v1684
  %1686 = vmatpush.msra.mxu0 %v1685
  %v1687 = vand.u32 %v92, 4294901760
  %v1688 = vsub.f32 %v92, %v1687
  %1689 = vmatpush.msra.mxu0 %v1688
  %v1690 = vand.u32 %v91, 4294901760
  %v1691 = vsub.f32 %v91, %v1690
  %1692 = vmatpush.msra.mxu0 %v1691
  %v1693 = vand.u32 %v90, 4294901760
  %v1694 = vsub.f32 %v90, %v1693
  %1695 = vmatpush.msra.mxu0 %v1694
  %v1696 = vand.u32 %v89, 4294901760
  %v1697 = vsub.f32 %v89, %v1696
  %1698 = vmatpush.msra.mxu0 %v1697
  %v1699 = vand.u32 %v88, 4294901760
  %v1700 = vsub.f32 %v88, %v1699
  %1701 = vmatpush.msra.mxu0 %v1700
  %v1702 = vand.u32 %v87, 4294901760
  %v1703 = vsub.f32 %v87, %v1702
  %1704 = vmatpush.msra.mxu0 %v1703
  %v1705 = vand.u32 %v86, 4294901760
  %v1706 = vsub.f32 %v86, %v1705
  %1707 = vmatpush.msra.mxu0 %v1706
  %v1708 = vand.u32 %v18, 4294901760
  %v1709 = vsub.f32 %v18, %v1708
  %1710 = vmatmul.f32.gmra.mxu0 %v1709
  %v1711 = vpop.f32.mrf.mxu0
  %v1712 = vadd.f32 %v1658, %v1711
  %1713 = vdwg.mxu0
  %v1714 = vand.u32 %v101, 4294901760
  %1715 = vmatpush.msra.mxu0 %v1714
  %v1716 = vand.u32 %v100, 4294901760
  %1717 = vmatpush.msra.mxu0 %v1716
  %v1718 = vand.u32 %v99, 4294901760
  %1719 = vmatpush.msra.mxu0 %v1718
  %v1720 = vand.u32 %v98, 4294901760
  %1721 = vmatpush.msra.mxu0 %v1720
  %v1722 = vand.u32 %v97, 4294901760
  %1723 = vmatpush.msra.mxu0 %v1722
  %v1724 = vand.u32 %v96, 4294901760
  %1725 = vmatpush.msra.mxu0 %v1724
  %v1726 = vand.u32 %v95, 4294901760
  %1727 = vmatpush.msra.mxu0 %v1726
  %v1728 = vand.u32 %v94, 4294901760
  %1729 = vmatpush.msra.mxu0 %v1728
  %v1730 = vand.u32 %v93, 4294901760
  %1731 = vmatpush.msra.mxu0 %v1730
  %v1732 = vand.u32 %v92, 4294901760
  %1733 = vmatpush.msra.mxu0 %v1732
  %v1734 = vand.u32 %v91, 4294901760
  %1735 = vmatpush.msra.mxu0 %v1734
  %v1736 = vand.u32 %v90, 4294901760
  %1737 = vmatpush.msra.mxu0 %v1736
  %v1738 = vand.u32 %v89, 4294901760
  %1739 = vmatpush.msra.mxu0 %v1738
  %v1740 = vand.u32 %v88, 4294901760
  %1741 = vmatpush.msra.mxu0 %v1740
  %v1742 = vand.u32 %v87, 4294901760
  %1743 = vmatpush.msra.mxu0 %v1742
  %v1744 = vand.u32 %v86, 4294901760
  %1745 = vmatpush.msra.mxu0 %v1744
  %v1746 = vand.u32 %v18, 4294901760
  %v1747 = vsub.f32 %v18, %v1746
  %v1748 = vand.u32 %v1747, 4294901760
  %1749 = vmatmul.f32.gmra.mxu0 %v1748
  %v1750 = vpop.f32.mrf.mxu0
  %v1751 = vadd.f32 %v1712, %v1750
  %1752 = vdwg.mxu0
  %v1753 = vand.u32 %v101, 4294901760
  %v1754 = vsub.f32 %v101, %v1753
  %v1755 = vand.u32 %v1754, 4294901760
  %1756 = vmatpush.msra.mxu0 %v1755
  %v1757 = vand.u32 %v100, 4294901760
  %v1758 = vsub.f32 %v100, %v1757
  %v1759 = vand.u32 %v1758, 4294901760
  %1760 = vmatpush.msra.mxu0 %v1759
  %v1761 = vand.u32 %v99, 4294901760
  %v1762 = vsub.f32 %v99, %v1761
  %v1763 = vand.u32 %v1762, 4294901760
  %1764 = vmatpush.msra.mxu0 %v1763
  %v1765 = vand.u32 %v98, 4294901760
  %v1766 = vsub.f32 %v98, %v1765
  %v1767 = vand.u32 %v1766, 4294901760
  %1768 = vmatpush.msra.mxu0 %v1767
  %v1769 = vand.u32 %v97, 4294901760
  %v1770 = vsub.f32 %v97, %v1769
  %v1771 = vand.u32 %v1770, 4294901760
  %1772 = vmatpush.msra.mxu0 %v1771
  %v1773 = vand.u32 %v96, 4294901760
  %v1774 = vsub.f32 %v96, %v1773
  %v1775 = vand.u32 %v1774, 4294901760
  %1776 = vmatpush.msra.mxu0 %v1775
  %v1777 = vand.u32 %v95, 4294901760
  %v1778 = vsub.f32 %v95, %v1777
  %v1779 = vand.u32 %v1778, 4294901760
  %1780 = vmatpush.msra.mxu0 %v1779
  %v1781 = vand.u32 %v94, 4294901760
  %v1782 = vsub.f32 %v94, %v1781
  %v1783 = vand.u32 %v1782, 4294901760
  %1784 = vmatpush.msra.mxu0 %v1783
  %v1785 = vand.u32 %v93, 4294901760
  %v1786 = vsub.f32 %v93, %v1785
  %v1787 = vand.u32 %v1786, 4294901760
  %1788 = vmatpush.msra.mxu0 %v1787
  %v1789 = vand.u32 %v92, 4294901760
  %v1790 = vsub.f32 %v92, %v1789
  %v1791 = vand.u32 %v1790, 4294901760
  %1792 = vmatpush.msra.mxu0 %v1791
  %v1793 = vand.u32 %v91, 4294901760
  %v1794 = vsub.f32 %v91, %v1793
  %v1795 = vand.u32 %v1794, 4294901760
  %1796 = vmatpush.msra.mxu0 %v1795
  %v1797 = vand.u32 %v90, 4294901760
  %v1798 = vsub.f32 %v90, %v1797
  %v1799 = vand.u32 %v1798, 4294901760
  %1800 = vmatpush.msra.mxu0 %v1799
  %v1801 = vand.u32 %v89, 4294901760
  %v1802 = vsub.f32 %v89, %v1801
  %v1803 = vand.u32 %v1802, 4294901760
  %1804 = vmatpush.msra.mxu0 %v1803
  %v1805 = vand.u32 %v88, 4294901760
  %v1806 = vsub.f32 %v88, %v1805
  %v1807 = vand.u32 %v1806, 4294901760
  %1808 = vmatpush.msra.mxu0 %v1807
  %v1809 = vand.u32 %v87, 4294901760
  %v1810 = vsub.f32 %v87, %v1809
  %v1811 = vand.u32 %v1810, 4294901760
  %1812 = vmatpush.msra.mxu0 %v1811
  %v1813 = vand.u32 %v86, 4294901760
  %v1814 = vsub.f32 %v86, %v1813
  %v1815 = vand.u32 %v1814, 4294901760
  %1816 = vmatpush.msra.mxu0 %v1815
  %v1817 = vand.u32 %v18, 4294901760
  %1818 = vmatmul.f32.gmra.mxu0 %v1817
  %v1819 = vpop.f32.mrf.mxu0
  %v1820 = vadd.f32 %v1751, %v1819
  %1821 = vdwg.mxu0
  %v1822 = vand.u32 %v101, 4294901760
  %1823 = vmatpush.msra.mxu0 %v1822
  %v1824 = vand.u32 %v100, 4294901760
  %1825 = vmatpush.msra.mxu0 %v1824
  %v1826 = vand.u32 %v99, 4294901760
  %1827 = vmatpush.msra.mxu0 %v1826
  %v1828 = vand.u32 %v98, 4294901760
  %1829 = vmatpush.msra.mxu0 %v1828
  %v1830 = vand.u32 %v97, 4294901760
  %1831 = vmatpush.msra.mxu0 %v1830
  %v1832 = vand.u32 %v96, 4294901760
  %1833 = vmatpush.msra.mxu0 %v1832
  %v1834 = vand.u32 %v95, 4294901760
  %1835 = vmatpush.msra.mxu0 %v1834
  %v1836 = vand.u32 %v94, 4294901760
  %1837 = vmatpush.msra.mxu0 %v1836
  %v1838 = vand.u32 %v93, 4294901760
  %1839 = vmatpush.msra.mxu0 %v1838
  %v1840 = vand.u32 %v92, 4294901760
  %1841 = vmatpush.msra.mxu0 %v1840
  %v1842 = vand.u32 %v91, 4294901760
  %1843 = vmatpush.msra.mxu0 %v1842
  %v1844 = vand.u32 %v90, 4294901760
  %1845 = vmatpush.msra.mxu0 %v1844
  %v1846 = vand.u32 %v89, 4294901760
  %1847 = vmatpush.msra.mxu0 %v1846
  %v1848 = vand.u32 %v88, 4294901760
  %1849 = vmatpush.msra.mxu0 %v1848
  %v1850 = vand.u32 %v87, 4294901760
  %1851 = vmatpush.msra.mxu0 %v1850
  %v1852 = vand.u32 %v86, 4294901760
  %1853 = vmatpush.msra.mxu0 %v1852
  %v1854 = vand.u32 %v18, 4294901760
  %1855 = vmatmul.f32.gmra.mxu0 %v1854
  %v1856 = vpop.f32.mrf.mxu0
  %v1857 = vadd.f32 %v1820, %v1856
  %1858 = vdwg.mxu0
  %v1859 = vand.u32 %v117, 4294901760
  %1860 = vmatpush.msra.mxu0 %v1859
  %v1861 = vand.u32 %v116, 4294901760
  %1862 = vmatpush.msra.mxu0 %v1861
  %v1863 = vand.u32 %v115, 4294901760
  %1864 = vmatpush.msra.mxu0 %v1863
  %v1865 = vand.u32 %v114, 4294901760
  %1866 = vmatpush.msra.mxu0 %v1865
  %v1867 = vand.u32 %v113, 4294901760
  %1868 = vmatpush.msra.mxu0 %v1867
  %v1869 = vand.u32 %v112, 4294901760
  %1870 = vmatpush.msra.mxu0 %v1869
  %v1871 = vand.u32 %v111, 4294901760
  %1872 = vmatpush.msra.mxu0 %v1871
  %v1873 = vand.u32 %v110, 4294901760
  %1874 = vmatpush.msra.mxu0 %v1873
  %v1875 = vand.u32 %v109, 4294901760
  %1876 = vmatpush.msra.mxu0 %v1875
  %v1877 = vand.u32 %v108, 4294901760
  %1878 = vmatpush.msra.mxu0 %v1877
  %v1879 = vand.u32 %v107, 4294901760
  %1880 = vmatpush.msra.mxu0 %v1879
  %v1881 = vand.u32 %v106, 4294901760
  %1882 = vmatpush.msra.mxu0 %v1881
  %v1883 = vand.u32 %v105, 4294901760
  %1884 = vmatpush.msra.mxu0 %v1883
  %v1885 = vand.u32 %v104, 4294901760
  %1886 = vmatpush.msra.mxu0 %v1885
  %v1887 = vand.u32 %v103, 4294901760
  %1888 = vmatpush.msra.mxu0 %v1887
  %v1889 = vand.u32 %v102, 4294901760
  %1890 = vmatpush.msra.mxu0 %v1889
  %v1891 = vand.u32 %v19, 4294901760
  %v1892 = vsub.f32 %v19, %v1891
  %v1893 = vand.u32 %v1892, 4294901760
  %v1894 = vsub.f32 %v1892, %v1893
  %v1895 = vand.u32 %v1894, 4294901760
  %1896 = vmatmul.f32.gmra.mxu0 %v1895
  %v1897 = vpop.f32.mrf.mxu0
  %v1898 = vadd.f32 %v1857, %v1897
  %1899 = vdwg.mxu0
  %v1900 = vand.u32 %v117, 4294901760
  %v1901 = vsub.f32 %v117, %v1900
  %v1902 = vand.u32 %v1901, 4294901760
  %v1903 = vsub.f32 %v1901, %v1902
  %v1904 = vand.u32 %v1903, 4294901760
  %1905 = vmatpush.msra.mxu0 %v1904
  %v1906 = vand.u32 %v116, 4294901760
  %v1907 = vsub.f32 %v116, %v1906
  %v1908 = vand.u32 %v1907, 4294901760
  %v1909 = vsub.f32 %v1907, %v1908
  %v1910 = vand.u32 %v1909, 4294901760
  %1911 = vmatpush.msra.mxu0 %v1910
  %v1912 = vand.u32 %v115, 4294901760
  %v1913 = vsub.f32 %v115, %v1912
  %v1914 = vand.u32 %v1913, 4294901760
  %v1915 = vsub.f32 %v1913, %v1914
  %v1916 = vand.u32 %v1915, 4294901760
  %1917 = vmatpush.msra.mxu0 %v1916
  %v1918 = vand.u32 %v114, 4294901760
  %v1919 = vsub.f32 %v114, %v1918
  %v1920 = vand.u32 %v1919, 4294901760
  %v1921 = vsub.f32 %v1919, %v1920
  %v1922 = vand.u32 %v1921, 4294901760
  %1923 = vmatpush.msra.mxu0 %v1922
  %v1924 = vand.u32 %v113, 4294901760
  %v1925 = vsub.f32 %v113, %v1924
  %v1926 = vand.u32 %v1925, 4294901760
  %v1927 = vsub.f32 %v1925, %v1926
  %v1928 = vand.u32 %v1927, 4294901760
  %1929 = vmatpush.msra.mxu0 %v1928
  %v1930 = vand.u32 %v112, 4294901760
  %v1931 = vsub.f32 %v112, %v1930
  %v1932 = vand.u32 %v1931, 4294901760
  %v1933 = vsub.f32 %v1931, %v1932
  %v1934 = vand.u32 %v1933, 4294901760
  %1935 = vmatpush.msra.mxu0 %v1934
  %v1936 = vand.u32 %v111, 4294901760
  %v1937 = vsub.f32 %v111, %v1936
  %v1938 = vand.u32 %v1937, 4294901760
  %v1939 = vsub.f32 %v1937, %v1938
  %v1940 = vand.u32 %v1939, 4294901760
  %1941 = vmatpush.msra.mxu0 %v1940
  %v1942 = vand.u32 %v110, 4294901760
  %v1943 = vsub.f32 %v110, %v1942
  %v1944 = vand.u32 %v1943, 4294901760
  %v1945 = vsub.f32 %v1943, %v1944
  %v1946 = vand.u32 %v1945, 4294901760
  %1947 = vmatpush.msra.mxu0 %v1946
  %v1948 = vand.u32 %v109, 4294901760
  %v1949 = vsub.f32 %v109, %v1948
  %v1950 = vand.u32 %v1949, 4294901760
  %v1951 = vsub.f32 %v1949, %v1950
  %v1952 = vand.u32 %v1951, 4294901760
  %1953 = vmatpush.msra.mxu0 %v1952
  %v1954 = vand.u32 %v108, 4294901760
  %v1955 = vsub.f32 %v108, %v1954
  %v1956 = vand.u32 %v1955, 4294901760
  %v1957 = vsub.f32 %v1955, %v1956
  %v1958 = vand.u32 %v1957, 4294901760
  %1959 = vmatpush.msra.mxu0 %v1958
  %v1960 = vand.u32 %v107, 4294901760
  %v1961 = vsub.f32 %v107, %v1960
  %v1962 = vand.u32 %v1961, 4294901760
  %v1963 = vsub.f32 %v1961, %v1962
  %v1964 = vand.u32 %v1963, 4294901760
  %1965 = vmatpush.msra.mxu0 %v1964
  %v1966 = vand.u32 %v106, 4294901760
  %v1967 = vsub.f32 %v106, %v1966
  %v1968 = vand.u32 %v1967, 4294901760
  %v1969 = vsub.f32 %v1967, %v1968
  %v1970 = vand.u32 %v1969, 4294901760
  %1971 = vmatpush.msra.mxu0 %v1970
  %v1972 = vand.u32 %v105, 4294901760
  %v1973 = vsub.f32 %v105, %v1972
  %v1974 = vand.u32 %v1973, 4294901760
  %v1975 = vsub.f32 %v1973, %v1974
  %v1976 = vand.u32 %v1975, 4294901760
  %1977 = vmatpush.msra.mxu0 %v1976
  %v1978 = vand.u32 %v104, 4294901760
  %v1979 = vsub.f32 %v104, %v1978
  %v1980 = vand.u32 %v1979, 4294901760
  %v1981 = vsub.f32 %v1979, %v1980
  %v1982 = vand.u32 %v1981, 4294901760
  %1983 = vmatpush.msra.mxu0 %v1982
  %v1984 = vand.u32 %v103, 4294901760
  %v1985 = vsub.f32 %v103, %v1984
  %v1986 = vand.u32 %v1985, 4294901760
  %v1987 = vsub.f32 %v1985, %v1986
  %v1988 = vand.u32 %v1987, 4294901760
  %1989 = vmatpush.msra.mxu0 %v1988
  %v1990 = vand.u32 %v102, 4294901760
  %v1991 = vsub.f32 %v102, %v1990
  %v1992 = vand.u32 %v1991, 4294901760
  %v1993 = vsub.f32 %v1991, %v1992
  %v1994 = vand.u32 %v1993, 4294901760
  %1995 = vmatpush.msra.mxu0 %v1994
  %v1996 = vand.u32 %v19, 4294901760
  %1997 = vmatmul.f32.gmra.mxu0 %v1996
  %v1998 = vpop.f32.mrf.mxu0
  %v1999 = vadd.f32 %v1898, %v1998
  %2000 = vdwg.mxu0
  %v2001 = vand.u32 %v117, 4294901760
  %v2002 = vsub.f32 %v117, %v2001
  %2003 = vmatpush.msra.mxu0 %v2002
  %v2004 = vand.u32 %v116, 4294901760
  %v2005 = vsub.f32 %v116, %v2004
  %2006 = vmatpush.msra.mxu0 %v2005
  %v2007 = vand.u32 %v115, 4294901760
  %v2008 = vsub.f32 %v115, %v2007
  %2009 = vmatpush.msra.mxu0 %v2008
  %v2010 = vand.u32 %v114, 4294901760
  %v2011 = vsub.f32 %v114, %v2010
  %2012 = vmatpush.msra.mxu0 %v2011
  %v2013 = vand.u32 %v113, 4294901760
  %v2014 = vsub.f32 %v113, %v2013
  %2015 = vmatpush.msra.mxu0 %v2014
  %v2016 = vand.u32 %v112, 4294901760
  %v2017 = vsub.f32 %v112, %v2016
  %2018 = vmatpush.msra.mxu0 %v2017
  %v2019 = vand.u32 %v111, 4294901760
  %v2020 = vsub.f32 %v111, %v2019
  %2021 = vmatpush.msra.mxu0 %v2020
  %v2022 = vand.u32 %v110, 4294901760
  %v2023 = vsub.f32 %v110, %v2022
  %2024 = vmatpush.msra.mxu0 %v2023
  %v2025 = vand.u32 %v109, 4294901760
  %v2026 = vsub.f32 %v109, %v2025
  %2027 = vmatpush.msra.mxu0 %v2026
  %v2028 = vand.u32 %v108, 4294901760
  %v2029 = vsub.f32 %v108, %v2028
  %2030 = vmatpush.msra.mxu0 %v2029
  %v2031 = vand.u32 %v107, 4294901760
  %v2032 = vsub.f32 %v107, %v2031
  %2033 = vmatpush.msra.mxu0 %v2032
  %v2034 = vand.u32 %v106, 4294901760
  %v2035 = vsub.f32 %v106, %v2034
  %2036 = vmatpush.msra.mxu0 %v2035
  %v2037 = vand.u32 %v105, 4294901760
  %v2038 = vsub.f32 %v105, %v2037
  %2039 = vmatpush.msra.mxu0 %v2038
  %v2040 = vand.u32 %v104, 4294901760
  %v2041 = vsub.f32 %v104, %v2040
  %2042 = vmatpush.msra.mxu0 %v2041
  %v2043 = vand.u32 %v103, 4294901760
  %v2044 = vsub.f32 %v103, %v2043
  %2045 = vmatpush.msra.mxu0 %v2044
  %v2046 = vand.u32 %v102, 4294901760
  %v2047 = vsub.f32 %v102, %v2046
  %2048 = vmatpush.msra.mxu0 %v2047
  %v2049 = vand.u32 %v19, 4294901760
  %v2050 = vsub.f32 %v19, %v2049
  %2051 = vmatmul.f32.gmra.mxu0 %v2050
  %v2052 = vpop.f32.mrf.mxu0
  %v2053 = vadd.f32 %v1999, %v2052
  %2054 = vdwg.mxu0
  %v2055 = vand.u32 %v117, 4294901760
  %2056 = vmatpush.msra.mxu0 %v2055
  %v2057 = vand.u32 %v116, 4294901760
  %2058 = vmatpush.msra.mxu0 %v2057
  %v2059 = vand.u32 %v115, 4294901760
  %2060 = vmatpush.msra.mxu0 %v2059
  %v2061 = vand.u32 %v114, 4294901760
  %2062 = vmatpush.msra.mxu0 %v2061
  %v2063 = vand.u32 %v113, 4294901760
  %2064 = vmatpush.msra.mxu0 %v2063
  %v2065 = vand.u32 %v112, 4294901760
  %2066 = vmatpush.msra.mxu0 %v2065
  %v2067 = vand.u32 %v111, 4294901760
  %2068 = vmatpush.msra.mxu0 %v2067
  %v2069 = vand.u32 %v110, 4294901760
  %2070 = vmatpush.msra.mxu0 %v2069
  %v2071 = vand.u32 %v109, 4294901760
  %2072 = vmatpush.msra.mxu0 %v2071
  %v2073 = vand.u32 %v108, 4294901760
  %2074 = vmatpush.msra.mxu0 %v2073
  %v2075 = vand.u32 %v107, 4294901760
  %2076 = vmatpush.msra.mxu0 %v2075
  %v2077 = vand.u32 %v106, 4294901760
  %2078 = vmatpush.msra.mxu0 %v2077
  %v2079 = vand.u32 %v105, 4294901760
  %2080 = vmatpush.msra.mxu0 %v2079
  %v2081 = vand.u32 %v104, 4294901760
  %2082 = vmatpush.msra.mxu0 %v2081
  %v2083 = vand.u32 %v103, 4294901760
  %2084 = vmatpush.msra.mxu0 %v2083
  %v2085 = vand.u32 %v102, 4294901760
  %2086 = vmatpush.msra.mxu0 %v2085
  %v2087 = vand.u32 %v19, 4294901760
  %v2088 = vsub.f32 %v19, %v2087
  %v2089 = vand.u32 %v2088, 4294901760
  %2090 = vmatmul.f32.gmra.mxu0 %v2089
  %v2091 = vpop.f32.mrf.mxu0
  %v2092 = vadd.f32 %v2053, %v2091
  %2093 = vdwg.mxu0
  %v2094 = vand.u32 %v117, 4294901760
  %v2095 = vsub.f32 %v117, %v2094
  %v2096 = vand.u32 %v2095, 4294901760
  %2097 = vmatpush.msra.mxu0 %v2096
  %v2098 = vand.u32 %v116, 4294901760
  %v2099 = vsub.f32 %v116, %v2098
  %v2100 = vand.u32 %v2099, 4294901760
  %2101 = vmatpush.msra.mxu0 %v2100
  %v2102 = vand.u32 %v115, 4294901760
  %v2103 = vsub.f32 %v115, %v2102
  %v2104 = vand.u32 %v2103, 4294901760
  %2105 = vmatpush.msra.mxu0 %v2104
  %v2106 = vand.u32 %v114, 4294901760
  %v2107 = vsub.f32 %v114, %v2106
  %v2108 = vand.u32 %v2107, 4294901760
  %2109 = vmatpush.msra.mxu0 %v2108
  %v2110 = vand.u32 %v113, 4294901760
  %v2111 = vsub.f32 %v113, %v2110
  %v2112 = vand.u32 %v2111, 4294901760
  %2113 = vmatpush.msra.mxu0 %v2112
  %v2114 = vand.u32 %v112, 4294901760
  %v2115 = vsub.f32 %v112, %v2114
  %v2116 = vand.u32 %v2115, 4294901760
  %2117 = vmatpush.msra.mxu0 %v2116
  %v2118 = vand.u32 %v111, 4294901760
  %v2119 = vsub.f32 %v111, %v2118
  %v2120 = vand.u32 %v2119, 4294901760
  %2121 = vmatpush.msra.mxu0 %v2120
  %v2122 = vand.u32 %v110, 4294901760
  %v2123 = vsub.f32 %v110, %v2122
  %v2124 = vand.u32 %v2123, 4294901760
  %2125 = vmatpush.msra.mxu0 %v2124
  %v2126 = vand.u32 %v109, 4294901760
  %v2127 = vsub.f32 %v109, %v2126
  %v2128 = vand.u32 %v2127, 4294901760
  %2129 = vmatpush.msra.mxu0 %v2128
  %v2130 = vand.u32 %v108, 4294901760
  %v2131 = vsub.f32 %v108, %v2130
  %v2132 = vand.u32 %v2131, 4294901760
  %2133 = vmatpush.msra.mxu0 %v2132
  %v2134 = vand.u32 %v107, 4294901760
  %v2135 = vsub.f32 %v107, %v2134
  %v2136 = vand.u32 %v2135, 4294901760
  %2137 = vmatpush.msra.mxu0 %v2136
  %v2138 = vand.u32 %v106, 4294901760
  %v2139 = vsub.f32 %v106, %v2138
  %v2140 = vand.u32 %v2139, 4294901760
  %2141 = vmatpush.msra.mxu0 %v2140
  %v2142 = vand.u32 %v105, 4294901760
  %v2143 = vsub.f32 %v105, %v2142
  %v2144 = vand.u32 %v2143, 4294901760
  %2145 = vmatpush.msra.mxu0 %v2144
  %v2146 = vand.u32 %v104, 4294901760
  %v2147 = vsub.f32 %v104, %v2146
  %v2148 = vand.u32 %v2147, 4294901760
  %2149 = vmatpush.msra.mxu0 %v2148
  %v2150 = vand.u32 %v103, 4294901760
  %v2151 = vsub.f32 %v103, %v2150
  %v2152 = vand.u32 %v2151, 4294901760
  %2153 = vmatpush.msra.mxu0 %v2152
  %v2154 = vand.u32 %v102, 4294901760
  %v2155 = vsub.f32 %v102, %v2154
  %v2156 = vand.u32 %v2155, 4294901760
  %2157 = vmatpush.msra.mxu0 %v2156
  %v2158 = vand.u32 %v19, 4294901760
  %2159 = vmatmul.f32.gmra.mxu0 %v2158
  %v2160 = vpop.f32.mrf.mxu0
  %v2161 = vadd.f32 %v2092, %v2160
  %2162 = vdwg.mxu0
  %v2163 = vand.u32 %v117, 4294901760
  %2164 = vmatpush.msra.mxu0 %v2163
  %v2165 = vand.u32 %v116, 4294901760
  %2166 = vmatpush.msra.mxu0 %v2165
  %v2167 = vand.u32 %v115, 4294901760
  %2168 = vmatpush.msra.mxu0 %v2167
  %v2169 = vand.u32 %v114, 4294901760
  %2170 = vmatpush.msra.mxu0 %v2169
  %v2171 = vand.u32 %v113, 4294901760
  %2172 = vmatpush.msra.mxu0 %v2171
  %v2173 = vand.u32 %v112, 4294901760
  %2174 = vmatpush.msra.mxu0 %v2173
  %v2175 = vand.u32 %v111, 4294901760
  %2176 = vmatpush.msra.mxu0 %v2175
  %v2177 = vand.u32 %v110, 4294901760
  %2178 = vmatpush.msra.mxu0 %v2177
  %v2179 = vand.u32 %v109, 4294901760
  %2180 = vmatpush.msra.mxu0 %v2179
  %v2181 = vand.u32 %v108, 4294901760
  %2182 = vmatpush.msra.mxu0 %v2181
  %v2183 = vand.u32 %v107, 4294901760
  %2184 = vmatpush.msra.mxu0 %v2183
  %v2185 = vand.u32 %v106, 4294901760
  %2186 = vmatpush.msra.mxu0 %v2185
  %v2187 = vand.u32 %v105, 4294901760
  %2188 = vmatpush.msra.mxu0 %v2187
  %v2189 = vand.u32 %v104, 4294901760
  %2190 = vmatpush.msra.mxu0 %v2189
  %v2191 = vand.u32 %v103, 4294901760
  %2192 = vmatpush.msra.mxu0 %v2191
  %v2193 = vand.u32 %v102, 4294901760
  %2194 = vmatpush.msra.mxu0 %v2193
  %v2195 = vand.u32 %v19, 4294901760
  %2196 = vmatmul.f32.gmra.mxu0 %v2195
  %v2197 = vpop.f32.mrf.mxu0
  %v2198 = vadd.f32 %v2161, %v2197
  %2199 = vdwg.mxu0
  %v2200 = vand.u32 %v133, 4294901760
  %2201 = vmatpush.msra.mxu0 %v2200
  %v2202 = vand.u32 %v132, 4294901760
  %2203 = vmatpush.msra.mxu0 %v2202
  %v2204 = vand.u32 %v131, 4294901760
  %2205 = vmatpush.msra.mxu0 %v2204
  %v2206 = vand.u32 %v130, 4294901760
  %2207 = vmatpush.msra.mxu0 %v2206
  %v2208 = vand.u32 %v129, 4294901760
  %2209 = vmatpush.msra.mxu0 %v2208
  %v2210 = vand.u32 %v128, 4294901760
  %2211 = vmatpush.msra.mxu0 %v2210
  %v2212 = vand.u32 %v127, 4294901760
  %2213 = vmatpush.msra.mxu0 %v2212
  %v2214 = vand.u32 %v126, 4294901760
  %2215 = vmatpush.msra.mxu0 %v2214
  %v2216 = vand.u32 %v125, 4294901760
  %2217 = vmatpush.msra.mxu0 %v2216
  %v2218 = vand.u32 %v124, 4294901760
  %2219 = vmatpush.msra.mxu0 %v2218
  %v2220 = vand.u32 %v123, 4294901760
  %2221 = vmatpush.msra.mxu0 %v2220
  %v2222 = vand.u32 %v122, 4294901760
  %2223 = vmatpush.msra.mxu0 %v2222
  %v2224 = vand.u32 %v121, 4294901760
  %2225 = vmatpush.msra.mxu0 %v2224
  %v2226 = vand.u32 %v120, 4294901760
  %2227 = vmatpush.msra.mxu0 %v2226
  %v2228 = vand.u32 %v119, 4294901760
  %2229 = vmatpush.msra.mxu0 %v2228
  %v2230 = vand.u32 %v118, 4294901760
  %2231 = vmatpush.msra.mxu0 %v2230
  %v2232 = vand.u32 %v20, 4294901760
  %v2233 = vsub.f32 %v20, %v2232
  %v2234 = vand.u32 %v2233, 4294901760
  %v2235 = vsub.f32 %v2233, %v2234
  %v2236 = vand.u32 %v2235, 4294901760
  %2237 = vmatmul.f32.gmra.mxu0 %v2236
  %v2238 = vpop.f32.mrf.mxu0
  %v2239 = vadd.f32 %v2198, %v2238
  %2240 = vdwg.mxu0
  %v2241 = vand.u32 %v133, 4294901760
  %v2242 = vsub.f32 %v133, %v2241
  %v2243 = vand.u32 %v2242, 4294901760
  %v2244 = vsub.f32 %v2242, %v2243
  %v2245 = vand.u32 %v2244, 4294901760
  %2246 = vmatpush.msra.mxu0 %v2245
  %v2247 = vand.u32 %v132, 4294901760
  %v2248 = vsub.f32 %v132, %v2247
  %v2249 = vand.u32 %v2248, 4294901760
  %v2250 = vsub.f32 %v2248, %v2249
  %v2251 = vand.u32 %v2250, 4294901760
  %2252 = vmatpush.msra.mxu0 %v2251
  %v2253 = vand.u32 %v131, 4294901760
  %v2254 = vsub.f32 %v131, %v2253
  %v2255 = vand.u32 %v2254, 4294901760
  %v2256 = vsub.f32 %v2254, %v2255
  %v2257 = vand.u32 %v2256, 4294901760
  %2258 = vmatpush.msra.mxu0 %v2257
  %v2259 = vand.u32 %v130, 4294901760
  %v2260 = vsub.f32 %v130, %v2259
  %v2261 = vand.u32 %v2260, 4294901760
  %v2262 = vsub.f32 %v2260, %v2261
  %v2263 = vand.u32 %v2262, 4294901760
  %2264 = vmatpush.msra.mxu0 %v2263
  %v2265 = vand.u32 %v129, 4294901760
  %v2266 = vsub.f32 %v129, %v2265
  %v2267 = vand.u32 %v2266, 4294901760
  %v2268 = vsub.f32 %v2266, %v2267
  %v2269 = vand.u32 %v2268, 4294901760
  %2270 = vmatpush.msra.mxu0 %v2269
  %v2271 = vand.u32 %v128, 4294901760
  %v2272 = vsub.f32 %v128, %v2271
  %v2273 = vand.u32 %v2272, 4294901760
  %v2274 = vsub.f32 %v2272, %v2273
  %v2275 = vand.u32 %v2274, 4294901760
  %2276 = vmatpush.msra.mxu0 %v2275
  %v2277 = vand.u32 %v127, 4294901760
  %v2278 = vsub.f32 %v127, %v2277
  %v2279 = vand.u32 %v2278, 4294901760
  %v2280 = vsub.f32 %v2278, %v2279
  %v2281 = vand.u32 %v2280, 4294901760
  %2282 = vmatpush.msra.mxu0 %v2281
  %v2283 = vand.u32 %v126, 4294901760
  %v2284 = vsub.f32 %v126, %v2283
  %v2285 = vand.u32 %v2284, 4294901760
  %v2286 = vsub.f32 %v2284, %v2285
  %v2287 = vand.u32 %v2286, 4294901760
  %2288 = vmatpush.msra.mxu0 %v2287
  %v2289 = vand.u32 %v125, 4294901760
  %v2290 = vsub.f32 %v125, %v2289
  %v2291 = vand.u32 %v2290, 4294901760
  %v2292 = vsub.f32 %v2290, %v2291
  %v2293 = vand.u32 %v2292, 4294901760
  %2294 = vmatpush.msra.mxu0 %v2293
  %v2295 = vand.u32 %v124, 4294901760
  %v2296 = vsub.f32 %v124, %v2295
  %v2297 = vand.u32 %v2296, 4294901760
  %v2298 = vsub.f32 %v2296, %v2297
  %v2299 = vand.u32 %v2298, 4294901760
  %2300 = vmatpush.msra.mxu0 %v2299
  %v2301 = vand.u32 %v123, 4294901760
  %v2302 = vsub.f32 %v123, %v2301
  %v2303 = vand.u32 %v2302, 4294901760
  %v2304 = vsub.f32 %v2302, %v2303
  %v2305 = vand.u32 %v2304, 4294901760
  %2306 = vmatpush.msra.mxu0 %v2305
  %v2307 = vand.u32 %v122, 4294901760
  %v2308 = vsub.f32 %v122, %v2307
  %v2309 = vand.u32 %v2308, 4294901760
  %v2310 = vsub.f32 %v2308, %v2309
  %v2311 = vand.u32 %v2310, 4294901760
  %2312 = vmatpush.msra.mxu0 %v2311
  %v2313 = vand.u32 %v121, 4294901760
  %v2314 = vsub.f32 %v121, %v2313
  %v2315 = vand.u32 %v2314, 4294901760
  %v2316 = vsub.f32 %v2314, %v2315
  %v2317 = vand.u32 %v2316, 4294901760
  %2318 = vmatpush.msra.mxu0 %v2317
  %v2319 = vand.u32 %v120, 4294901760
  %v2320 = vsub.f32 %v120, %v2319
  %v2321 = vand.u32 %v2320, 4294901760
  %v2322 = vsub.f32 %v2320, %v2321
  %v2323 = vand.u32 %v2322, 4294901760
  %2324 = vmatpush.msra.mxu0 %v2323
  %v2325 = vand.u32 %v119, 4294901760
  %v2326 = vsub.f32 %v119, %v2325
  %v2327 = vand.u32 %v2326, 4294901760
  %v2328 = vsub.f32 %v2326, %v2327
  %v2329 = vand.u32 %v2328, 4294901760
  %2330 = vmatpush.msra.mxu0 %v2329
  %v2331 = vand.u32 %v118, 4294901760
  %v2332 = vsub.f32 %v118, %v2331
  %v2333 = vand.u32 %v2332, 4294901760
  %v2334 = vsub.f32 %v2332, %v2333
  %v2335 = vand.u32 %v2334, 4294901760
  %2336 = vmatpush.msra.mxu0 %v2335
  %v2337 = vand.u32 %v20, 4294901760
  %2338 = vmatmul.f32.gmra.mxu0 %v2337
  %v2339 = vpop.f32.mrf.mxu0
  %v2340 = vadd.f32 %v2239, %v2339
  %2341 = vdwg.mxu0
  %v2342 = vand.u32 %v133, 4294901760
  %v2343 = vsub.f32 %v133, %v2342
  %2344 = vmatpush.msra.mxu0 %v2343
  %v2345 = vand.u32 %v132, 4294901760
  %v2346 = vsub.f32 %v132, %v2345
  %2347 = vmatpush.msra.mxu0 %v2346
  %v2348 = vand.u32 %v131, 4294901760
  %v2349 = vsub.f32 %v131, %v2348
  %2350 = vmatpush.msra.mxu0 %v2349
  %v2351 = vand.u32 %v130, 4294901760
  %v2352 = vsub.f32 %v130, %v2351
  %2353 = vmatpush.msra.mxu0 %v2352
  %v2354 = vand.u32 %v129, 4294901760
  %v2355 = vsub.f32 %v129, %v2354
  %2356 = vmatpush.msra.mxu0 %v2355
  %v2357 = vand.u32 %v128, 4294901760
  %v2358 = vsub.f32 %v128, %v2357
  %2359 = vmatpush.msra.mxu0 %v2358
  %v2360 = vand.u32 %v127, 4294901760
  %v2361 = vsub.f32 %v127, %v2360
  %2362 = vmatpush.msra.mxu0 %v2361
  %v2363 = vand.u32 %v126, 4294901760
  %v2364 = vsub.f32 %v126, %v2363
  %2365 = vmatpush.msra.mxu0 %v2364
  %v2366 = vand.u32 %v125, 4294901760
  %v2367 = vsub.f32 %v125, %v2366
  %2368 = vmatpush.msra.mxu0 %v2367
  %v2369 = vand.u32 %v124, 4294901760
  %v2370 = vsub.f32 %v124, %v2369
  %2371 = vmatpush.msra.mxu0 %v2370
  %v2372 = vand.u32 %v123, 4294901760
  %v2373 = vsub.f32 %v123, %v2372
  %2374 = vmatpush.msra.mxu0 %v2373
  %v2375 = vand.u32 %v122, 4294901760
  %v2376 = vsub.f32 %v122, %v2375
  %2377 = vmatpush.msra.mxu0 %v2376
  %v2378 = vand.u32 %v121, 4294901760
  %v2379 = vsub.f32 %v121, %v2378
  %2380 = vmatpush.msra.mxu0 %v2379
  %v2381 = vand.u32 %v120, 4294901760
  %v2382 = vsub.f32 %v120, %v2381
  %2383 = vmatpush.msra.mxu0 %v2382
  %v2384 = vand.u32 %v119, 4294901760
  %v2385 = vsub.f32 %v119, %v2384
  %2386 = vmatpush.msra.mxu0 %v2385
  %v2387 = vand.u32 %v118, 4294901760
  %v2388 = vsub.f32 %v118, %v2387
  %2389 = vmatpush.msra.mxu0 %v2388
  %v2390 = vand.u32 %v20, 4294901760
  %v2391 = vsub.f32 %v20, %v2390
  %2392 = vmatmul.f32.gmra.mxu0 %v2391
  %v2393 = vpop.f32.mrf.mxu0
  %v2394 = vadd.f32 %v2340, %v2393
  %2395 = vdwg.mxu0
  %v2396 = vand.u32 %v133, 4294901760
  %2397 = vmatpush.msra.mxu0 %v2396
  %v2398 = vand.u32 %v132, 4294901760
  %2399 = vmatpush.msra.mxu0 %v2398
  %v2400 = vand.u32 %v131, 4294901760
  %2401 = vmatpush.msra.mxu0 %v2400
  %v2402 = vand.u32 %v130, 4294901760
  %2403 = vmatpush.msra.mxu0 %v2402
  %v2404 = vand.u32 %v129, 4294901760
  %2405 = vmatpush.msra.mxu0 %v2404
  %v2406 = vand.u32 %v128, 4294901760
  %2407 = vmatpush.msra.mxu0 %v2406
  %v2408 = vand.u32 %v127, 4294901760
  %2409 = vmatpush.msra.mxu0 %v2408
  %v2410 = vand.u32 %v126, 4294901760
  %2411 = vmatpush.msra.mxu0 %v2410
  %v2412 = vand.u32 %v125, 4294901760
  %2413 = vmatpush.msra.mxu0 %v2412
  %v2414 = vand.u32 %v124, 4294901760
  %2415 = vmatpush.msra.mxu0 %v2414
  %v2416 = vand.u32 %v123, 4294901760
  %2417 = vmatpush.msra.mxu0 %v2416
  %v2418 = vand.u32 %v122, 4294901760
  %2419 = vmatpush.msra.mxu0 %v2418
  %v2420 = vand.u32 %v121, 4294901760
  %2421 = vmatpush.msra.mxu0 %v2420
  %v2422 = vand.u32 %v120, 4294901760
  %2423 = vmatpush.msra.mxu0 %v2422
  %v2424 = vand.u32 %v119, 4294901760
  %2425 = vmatpush.msra.mxu0 %v2424
  %v2426 = vand.u32 %v118, 4294901760
  %2427 = vmatpush.msra.mxu0 %v2426
  %v2428 = vand.u32 %v20, 4294901760
  %v2429 = vsub.f32 %v20, %v2428
  %v2430 = vand.u32 %v2429, 4294901760
  %2431 = vmatmul.f32.gmra.mxu0 %v2430
  %v2432 = vpop.f32.mrf.mxu0
  %v2433 = vadd.f32 %v2394, %v2432
  %2434 = vdwg.mxu0
  %v2435 = vand.u32 %v133, 4294901760
  %v2436 = vsub.f32 %v133, %v2435
  %v2437 = vand.u32 %v2436, 4294901760
  %2438 = vmatpush.msra.mxu0 %v2437
  %v2439 = vand.u32 %v132, 4294901760
  %v2440 = vsub.f32 %v132, %v2439
  %v2441 = vand.u32 %v2440, 4294901760
  %2442 = vmatpush.msra.mxu0 %v2441
  %v2443 = vand.u32 %v131, 4294901760
  %v2444 = vsub.f32 %v131, %v2443
  %v2445 = vand.u32 %v2444, 4294901760
  %2446 = vmatpush.msra.mxu0 %v2445
  %v2447 = vand.u32 %v130, 4294901760
  %v2448 = vsub.f32 %v130, %v2447
  %v2449 = vand.u32 %v2448, 4294901760
  %2450 = vmatpush.msra.mxu0 %v2449
  %v2451 = vand.u32 %v129, 4294901760
  %v2452 = vsub.f32 %v129, %v2451
  %v2453 = vand.u32 %v2452, 4294901760
  %2454 = vmatpush.msra.mxu0 %v2453
  %v2455 = vand.u32 %v128, 4294901760
  %v2456 = vsub.f32 %v128, %v2455
  %v2457 = vand.u32 %v2456, 4294901760
  %2458 = vmatpush.msra.mxu0 %v2457
  %v2459 = vand.u32 %v127, 4294901760
  %v2460 = vsub.f32 %v127, %v2459
  %v2461 = vand.u32 %v2460, 4294901760
  %2462 = vmatpush.msra.mxu0 %v2461
  %v2463 = vand.u32 %v126, 4294901760
  %v2464 = vsub.f32 %v126, %v2463
  %v2465 = vand.u32 %v2464, 4294901760
  %2466 = vmatpush.msra.mxu0 %v2465
  %v2467 = vand.u32 %v125, 4294901760
  %v2468 = vsub.f32 %v125, %v2467
  %v2469 = vand.u32 %v2468, 4294901760
  %2470 = vmatpush.msra.mxu0 %v2469
  %v2471 = vand.u32 %v124, 4294901760
  %v2472 = vsub.f32 %v124, %v2471
  %v2473 = vand.u32 %v2472, 4294901760
  %2474 = vmatpush.msra.mxu0 %v2473
  %v2475 = vand.u32 %v123, 4294901760
  %v2476 = vsub.f32 %v123, %v2475
  %v2477 = vand.u32 %v2476, 4294901760
  %2478 = vmatpush.msra.mxu0 %v2477
  %v2479 = vand.u32 %v122, 4294901760
  %v2480 = vsub.f32 %v122, %v2479
  %v2481 = vand.u32 %v2480, 4294901760
  %2482 = vmatpush.msra.mxu0 %v2481
  %v2483 = vand.u32 %v121, 4294901760
  %v2484 = vsub.f32 %v121, %v2483
  %v2485 = vand.u32 %v2484, 4294901760
  %2486 = vmatpush.msra.mxu0 %v2485
  %v2487 = vand.u32 %v120, 4294901760
  %v2488 = vsub.f32 %v120, %v2487
  %v2489 = vand.u32 %v2488, 4294901760
  %2490 = vmatpush.msra.mxu0 %v2489
  %v2491 = vand.u32 %v119, 4294901760
  %v2492 = vsub.f32 %v119, %v2491
  %v2493 = vand.u32 %v2492, 4294901760
  %2494 = vmatpush.msra.mxu0 %v2493
  %v2495 = vand.u32 %v118, 4294901760
  %v2496 = vsub.f32 %v118, %v2495
  %v2497 = vand.u32 %v2496, 4294901760
  %2498 = vmatpush.msra.mxu0 %v2497
  %v2499 = vand.u32 %v20, 4294901760
  %2500 = vmatmul.f32.gmra.mxu0 %v2499
  %v2501 = vpop.f32.mrf.mxu0
  %v2502 = vadd.f32 %v2433, %v2501
  %2503 = vdwg.mxu0
  %v2504 = vand.u32 %v133, 4294901760
  %2505 = vmatpush.msra.mxu0 %v2504
  %v2506 = vand.u32 %v132, 4294901760
  %2507 = vmatpush.msra.mxu0 %v2506
  %v2508 = vand.u32 %v131, 4294901760
  %2509 = vmatpush.msra.mxu0 %v2508
  %v2510 = vand.u32 %v130, 4294901760
  %2511 = vmatpush.msra.mxu0 %v2510
  %v2512 = vand.u32 %v129, 4294901760
  %2513 = vmatpush.msra.mxu0 %v2512
  %v2514 = vand.u32 %v128, 4294901760
  %2515 = vmatpush.msra.mxu0 %v2514
  %v2516 = vand.u32 %v127, 4294901760
  %2517 = vmatpush.msra.mxu0 %v2516
  %v2518 = vand.u32 %v126, 4294901760
  %2519 = vmatpush.msra.mxu0 %v2518
  %v2520 = vand.u32 %v125, 4294901760
  %2521 = vmatpush.msra.mxu0 %v2520
  %v2522 = vand.u32 %v124, 4294901760
  %2523 = vmatpush.msra.mxu0 %v2522
  %v2524 = vand.u32 %v123, 4294901760
  %2525 = vmatpush.msra.mxu0 %v2524
  %v2526 = vand.u32 %v122, 4294901760
  %2527 = vmatpush.msra.mxu0 %v2526
  %v2528 = vand.u32 %v121, 4294901760
  %2529 = vmatpush.msra.mxu0 %v2528
  %v2530 = vand.u32 %v120, 4294901760
  %2531 = vmatpush.msra.mxu0 %v2530
  %v2532 = vand.u32 %v119, 4294901760
  %2533 = vmatpush.msra.mxu0 %v2532
  %v2534 = vand.u32 %v118, 4294901760
  %2535 = vmatpush.msra.mxu0 %v2534
  %v2536 = vand.u32 %v20, 4294901760
  %2537 = vmatmul.f32.gmra.mxu0 %v2536
  %v2538 = vpop.f32.mrf.mxu0
  %v2539 = vadd.f32 %v2502, %v2538
  %2540 = vdwg.mxu0
  %v2541 = vand.u32 %v149, 4294901760
  %2542 = vmatpush.msra.mxu0 %v2541
  %v2543 = vand.u32 %v148, 4294901760
  %2544 = vmatpush.msra.mxu0 %v2543
  %v2545 = vand.u32 %v147, 4294901760
  %2546 = vmatpush.msra.mxu0 %v2545
  %v2547 = vand.u32 %v146, 4294901760
  %2548 = vmatpush.msra.mxu0 %v2547
  %v2549 = vand.u32 %v145, 4294901760
  %2550 = vmatpush.msra.mxu0 %v2549
  %v2551 = vand.u32 %v144, 4294901760
  %2552 = vmatpush.msra.mxu0 %v2551
  %v2553 = vand.u32 %v143, 4294901760
  %2554 = vmatpush.msra.mxu0 %v2553
  %v2555 = vand.u32 %v142, 4294901760
  %2556 = vmatpush.msra.mxu0 %v2555
  %v2557 = vand.u32 %v141, 4294901760
  %2558 = vmatpush.msra.mxu0 %v2557
  %v2559 = vand.u32 %v140, 4294901760
  %2560 = vmatpush.msra.mxu0 %v2559
  %v2561 = vand.u32 %v139, 4294901760
  %2562 = vmatpush.msra.mxu0 %v2561
  %v2563 = vand.u32 %v138, 4294901760
  %2564 = vmatpush.msra.mxu0 %v2563
  %v2565 = vand.u32 %v137, 4294901760
  %2566 = vmatpush.msra.mxu0 %v2565
  %v2567 = vand.u32 %v136, 4294901760
  %2568 = vmatpush.msra.mxu0 %v2567
  %v2569 = vand.u32 %v135, 4294901760
  %2570 = vmatpush.msra.mxu0 %v2569
  %v2571 = vand.u32 %v134, 4294901760
  %2572 = vmatpush.msra.mxu0 %v2571
  %v2573 = vand.u32 %v21, 4294901760
  %v2574 = vsub.f32 %v21, %v2573
  %v2575 = vand.u32 %v2574, 4294901760
  %v2576 = vsub.f32 %v2574, %v2575
  %v2577 = vand.u32 %v2576, 4294901760
  %2578 = vmatmul.f32.gmra.mxu0 %v2577
  %v2579 = vpop.f32.mrf.mxu0
  %v2580 = vadd.f32 %v2539, %v2579
  %2581 = vdwg.mxu0
  %v2582 = vand.u32 %v149, 4294901760
  %v2583 = vsub.f32 %v149, %v2582
  %v2584 = vand.u32 %v2583, 4294901760
  %v2585 = vsub.f32 %v2583, %v2584
  %v2586 = vand.u32 %v2585, 4294901760
  %2587 = vmatpush.msra.mxu0 %v2586
  %v2588 = vand.u32 %v148, 4294901760
  %v2589 = vsub.f32 %v148, %v2588
  %v2590 = vand.u32 %v2589, 4294901760
  %v2591 = vsub.f32 %v2589, %v2590
  %v2592 = vand.u32 %v2591, 4294901760
  %2593 = vmatpush.msra.mxu0 %v2592
  %v2594 = vand.u32 %v147, 4294901760
  %v2595 = vsub.f32 %v147, %v2594
  %v2596 = vand.u32 %v2595, 4294901760
  %v2597 = vsub.f32 %v2595, %v2596
  %v2598 = vand.u32 %v2597, 4294901760
  %2599 = vmatpush.msra.mxu0 %v2598
  %v2600 = vand.u32 %v146, 4294901760
  %v2601 = vsub.f32 %v146, %v2600
  %v2602 = vand.u32 %v2601, 4294901760
  %v2603 = vsub.f32 %v2601, %v2602
  %v2604 = vand.u32 %v2603, 4294901760
  %2605 = vmatpush.msra.mxu0 %v2604
  %v2606 = vand.u32 %v145, 4294901760
  %v2607 = vsub.f32 %v145, %v2606
  %v2608 = vand.u32 %v2607, 4294901760
  %v2609 = vsub.f32 %v2607, %v2608
  %v2610 = vand.u32 %v2609, 4294901760
  %2611 = vmatpush.msra.mxu0 %v2610
  %v2612 = vand.u32 %v144, 4294901760
  %v2613 = vsub.f32 %v144, %v2612
  %v2614 = vand.u32 %v2613, 4294901760
  %v2615 = vsub.f32 %v2613, %v2614
  %v2616 = vand.u32 %v2615, 4294901760
  %2617 = vmatpush.msra.mxu0 %v2616
  %v2618 = vand.u32 %v143, 4294901760
  %v2619 = vsub.f32 %v143, %v2618
  %v2620 = vand.u32 %v2619, 4294901760
  %v2621 = vsub.f32 %v2619, %v2620
  %v2622 = vand.u32 %v2621, 4294901760
  %2623 = vmatpush.msra.mxu0 %v2622
  %v2624 = vand.u32 %v142, 4294901760
  %v2625 = vsub.f32 %v142, %v2624
  %v2626 = vand.u32 %v2625, 4294901760
  %v2627 = vsub.f32 %v2625, %v2626
  %v2628 = vand.u32 %v2627, 4294901760
  %2629 = vmatpush.msra.mxu0 %v2628
  %v2630 = vand.u32 %v141, 4294901760
  %v2631 = vsub.f32 %v141, %v2630
  %v2632 = vand.u32 %v2631, 4294901760
  %v2633 = vsub.f32 %v2631, %v2632
  %v2634 = vand.u32 %v2633, 4294901760
  %2635 = vmatpush.msra.mxu0 %v2634
  %v2636 = vand.u32 %v140, 4294901760
  %v2637 = vsub.f32 %v140, %v2636
  %v2638 = vand.u32 %v2637, 4294901760
  %v2639 = vsub.f32 %v2637, %v2638
  %v2640 = vand.u32 %v2639, 4294901760
  %2641 = vmatpush.msra.mxu0 %v2640
  %v2642 = vand.u32 %v139, 4294901760
  %v2643 = vsub.f32 %v139, %v2642
  %v2644 = vand.u32 %v2643, 4294901760
  %v2645 = vsub.f32 %v2643, %v2644
  %v2646 = vand.u32 %v2645, 4294901760
  %2647 = vmatpush.msra.mxu0 %v2646
  %v2648 = vand.u32 %v138, 4294901760
  %v2649 = vsub.f32 %v138, %v2648
  %v2650 = vand.u32 %v2649, 4294901760
  %v2651 = vsub.f32 %v2649, %v2650
  %v2652 = vand.u32 %v2651, 4294901760
  %2653 = vmatpush.msra.mxu0 %v2652
  %v2654 = vand.u32 %v137, 4294901760
  %v2655 = vsub.f32 %v137, %v2654
  %v2656 = vand.u32 %v2655, 4294901760
  %v2657 = vsub.f32 %v2655, %v2656
  %v2658 = vand.u32 %v2657, 4294901760
  %2659 = vmatpush.msra.mxu0 %v2658
  %v2660 = vand.u32 %v136, 4294901760
  %v2661 = vsub.f32 %v136, %v2660
  %v2662 = vand.u32 %v2661, 4294901760
  %v2663 = vsub.f32 %v2661, %v2662
  %v2664 = vand.u32 %v2663, 4294901760
  %2665 = vmatpush.msra.mxu0 %v2664
  %v2666 = vand.u32 %v135, 4294901760
  %v2667 = vsub.f32 %v135, %v2666
  %v2668 = vand.u32 %v2667, 4294901760
  %v2669 = vsub.f32 %v2667, %v2668
  %v2670 = vand.u32 %v2669, 4294901760
  %2671 = vmatpush.msra.mxu0 %v2670
  %v2672 = vand.u32 %v134, 4294901760
  %v2673 = vsub.f32 %v134, %v2672
  %v2674 = vand.u32 %v2673, 4294901760
  %v2675 = vsub.f32 %v2673, %v2674
  %v2676 = vand.u32 %v2675, 4294901760
  %2677 = vmatpush.msra.mxu0 %v2676
  %v2678 = vand.u32 %v21, 4294901760
  %2679 = vmatmul.f32.gmra.mxu0 %v2678
  %v2680 = vpop.f32.mrf.mxu0
  %v2681 = vadd.f32 %v2580, %v2680
  %2682 = vdwg.mxu0
  %v2683 = vand.u32 %v149, 4294901760
  %v2684 = vsub.f32 %v149, %v2683
  %2685 = vmatpush.msra.mxu0 %v2684
  %v2686 = vand.u32 %v148, 4294901760
  %v2687 = vsub.f32 %v148, %v2686
  %2688 = vmatpush.msra.mxu0 %v2687
  %v2689 = vand.u32 %v147, 4294901760
  %v2690 = vsub.f32 %v147, %v2689
  %2691 = vmatpush.msra.mxu0 %v2690
  %v2692 = vand.u32 %v146, 4294901760
  %v2693 = vsub.f32 %v146, %v2692
  %2694 = vmatpush.msra.mxu0 %v2693
  %v2695 = vand.u32 %v145, 4294901760
  %v2696 = vsub.f32 %v145, %v2695
  %2697 = vmatpush.msra.mxu0 %v2696
  %v2698 = vand.u32 %v144, 4294901760
  %v2699 = vsub.f32 %v144, %v2698
  %2700 = vmatpush.msra.mxu0 %v2699
  %v2701 = vand.u32 %v143, 4294901760
  %v2702 = vsub.f32 %v143, %v2701
  %2703 = vmatpush.msra.mxu0 %v2702
  %v2704 = vand.u32 %v142, 4294901760
  %v2705 = vsub.f32 %v142, %v2704
  %2706 = vmatpush.msra.mxu0 %v2705
  %v2707 = vand.u32 %v141, 4294901760
  %v2708 = vsub.f32 %v141, %v2707
  %2709 = vmatpush.msra.mxu0 %v2708
  %v2710 = vand.u32 %v140, 4294901760
  %v2711 = vsub.f32 %v140, %v2710
  %2712 = vmatpush.msra.mxu0 %v2711
  %v2713 = vand.u32 %v139, 4294901760
  %v2714 = vsub.f32 %v139, %v2713
  %2715 = vmatpush.msra.mxu0 %v2714
  %v2716 = vand.u32 %v138, 4294901760
  %v2717 = vsub.f32 %v138, %v2716
  %2718 = vmatpush.msra.mxu0 %v2717
  %v2719 = vand.u32 %v137, 4294901760
  %v2720 = vsub.f32 %v137, %v2719
  %2721 = vmatpush.msra.mxu0 %v2720
  %v2722 = vand.u32 %v136, 4294901760
  %v2723 = vsub.f32 %v136, %v2722
  %2724 = vmatpush.msra.mxu0 %v2723
  %v2725 = vand.u32 %v135, 4294901760
  %v2726 = vsub.f32 %v135, %v2725
  %2727 = vmatpush.msra.mxu0 %v2726
  %v2728 = vand.u32 %v134, 4294901760
  %v2729 = vsub.f32 %v134, %v2728
  %2730 = vmatpush.msra.mxu0 %v2729
  %v2731 = vand.u32 %v21, 4294901760
  %v2732 = vsub.f32 %v21, %v2731
  %2733 = vmatmul.f32.gmra.mxu0 %v2732
  %v2734 = vpop.f32.mrf.mxu0
  %v2735 = vadd.f32 %v2681, %v2734
  %2736 = vdwg.mxu0
  %v2737 = vand.u32 %v149, 4294901760
  %2738 = vmatpush.msra.mxu0 %v2737
  %v2739 = vand.u32 %v148, 4294901760
  %2740 = vmatpush.msra.mxu0 %v2739
  %v2741 = vand.u32 %v147, 4294901760
  %2742 = vmatpush.msra.mxu0 %v2741
  %v2743 = vand.u32 %v146, 4294901760
  %2744 = vmatpush.msra.mxu0 %v2743
  %v2745 = vand.u32 %v145, 4294901760
  %2746 = vmatpush.msra.mxu0 %v2745
  %v2747 = vand.u32 %v144, 4294901760
  %2748 = vmatpush.msra.mxu0 %v2747
  %v2749 = vand.u32 %v143, 4294901760
  %2750 = vmatpush.msra.mxu0 %v2749
  %v2751 = vand.u32 %v142, 4294901760
  %2752 = vmatpush.msra.mxu0 %v2751
  %v2753 = vand.u32 %v141, 4294901760
  %2754 = vmatpush.msra.mxu0 %v2753
  %v2755 = vand.u32 %v140, 4294901760
  %2756 = vmatpush.msra.mxu0 %v2755
  %v2757 = vand.u32 %v139, 4294901760
  %2758 = vmatpush.msra.mxu0 %v2757
  %v2759 = vand.u32 %v138, 4294901760
  %2760 = vmatpush.msra.mxu0 %v2759
  %v2761 = vand.u32 %v137, 4294901760
  %2762 = vmatpush.msra.mxu0 %v2761
  %v2763 = vand.u32 %v136, 4294901760
  %2764 = vmatpush.msra.mxu0 %v2763
  %v2765 = vand.u32 %v135, 4294901760
  %2766 = vmatpush.msra.mxu0 %v2765
  %v2767 = vand.u32 %v134, 4294901760
  %2768 = vmatpush.msra.mxu0 %v2767
  %v2769 = vand.u32 %v21, 4294901760
  %v2770 = vsub.f32 %v21, %v2769
  %v2771 = vand.u32 %v2770, 4294901760
  %2772 = vmatmul.f32.gmra.mxu0 %v2771
  %v2773 = vpop.f32.mrf.mxu0
  %v2774 = vadd.f32 %v2735, %v2773
  %2775 = vdwg.mxu0
  %v2776 = vand.u32 %v149, 4294901760
  %v2777 = vsub.f32 %v149, %v2776
  %v2778 = vand.u32 %v2777, 4294901760
  %2779 = vmatpush.msra.mxu0 %v2778
  %v2780 = vand.u32 %v148, 4294901760
  %v2781 = vsub.f32 %v148, %v2780
  %v2782 = vand.u32 %v2781, 4294901760
  %2783 = vmatpush.msra.mxu0 %v2782
  %v2784 = vand.u32 %v147, 4294901760
  %v2785 = vsub.f32 %v147, %v2784
  %v2786 = vand.u32 %v2785, 4294901760
  %2787 = vmatpush.msra.mxu0 %v2786
  %v2788 = vand.u32 %v146, 4294901760
  %v2789 = vsub.f32 %v146, %v2788
  %v2790 = vand.u32 %v2789, 4294901760
  %2791 = vmatpush.msra.mxu0 %v2790
  %v2792 = vand.u32 %v145, 4294901760
  %v2793 = vsub.f32 %v145, %v2792
  %v2794 = vand.u32 %v2793, 4294901760
  %2795 = vmatpush.msra.mxu0 %v2794
  %v2796 = vand.u32 %v144, 4294901760
  %v2797 = vsub.f32 %v144, %v2796
  %v2798 = vand.u32 %v2797, 4294901760
  %2799 = vmatpush.msra.mxu0 %v2798
  %v2800 = vand.u32 %v143, 4294901760
  %v2801 = vsub.f32 %v143, %v2800
  %v2802 = vand.u32 %v2801, 4294901760
  %2803 = vmatpush.msra.mxu0 %v2802
  %v2804 = vand.u32 %v142, 4294901760
  %v2805 = vsub.f32 %v142, %v2804
  %v2806 = vand.u32 %v2805, 4294901760
  %2807 = vmatpush.msra.mxu0 %v2806
  %v2808 = vand.u32 %v141, 4294901760
  %v2809 = vsub.f32 %v141, %v2808
  %v2810 = vand.u32 %v2809, 4294901760
  %2811 = vmatpush.msra.mxu0 %v2810
  %v2812 = vand.u32 %v140, 4294901760
  %v2813 = vsub.f32 %v140, %v2812
  %v2814 = vand.u32 %v2813, 4294901760
  %2815 = vmatpush.msra.mxu0 %v2814
  %v2816 = vand.u32 %v139, 4294901760
  %v2817 = vsub.f32 %v139, %v2816
  %v2818 = vand.u32 %v2817, 4294901760
  %2819 = vmatpush.msra.mxu0 %v2818
  %v2820 = vand.u32 %v138, 4294901760
  %v2821 = vsub.f32 %v138, %v2820
  %v2822 = vand.u32 %v2821, 4294901760
  %2823 = vmatpush.msra.mxu0 %v2822
  %v2824 = vand.u32 %v137, 4294901760
  %v2825 = vsub.f32 %v137, %v2824
  %v2826 = vand.u32 %v2825, 4294901760
  %2827 = vmatpush.msra.mxu0 %v2826
  %v2828 = vand.u32 %v136, 4294901760
  %v2829 = vsub.f32 %v136, %v2828
  %v2830 = vand.u32 %v2829, 4294901760
  %2831 = vmatpush.msra.mxu0 %v2830
  %v2832 = vand.u32 %v135, 4294901760
  %v2833 = vsub.f32 %v135, %v2832
  %v2834 = vand.u32 %v2833, 4294901760
  %2835 = vmatpush.msra.mxu0 %v2834
  %v2836 = vand.u32 %v134, 4294901760
  %v2837 = vsub.f32 %v134, %v2836
  %v2838 = vand.u32 %v2837, 4294901760
  %2839 = vmatpush.msra.mxu0 %v2838
  %v2840 = vand.u32 %v21, 4294901760
  %2841 = vmatmul.f32.gmra.mxu0 %v2840
  %v2842 = vpop.f32.mrf.mxu0
  %v2843 = vadd.f32 %v2774, %v2842
  %2844 = vdwg.mxu0
  %v2845 = vand.u32 %v149, 4294901760
  %2846 = vmatpush.msra.mxu0 %v2845
  %v2847 = vand.u32 %v148, 4294901760
  %2848 = vmatpush.msra.mxu0 %v2847
  %v2849 = vand.u32 %v147, 4294901760
  %2850 = vmatpush.msra.mxu0 %v2849
  %v2851 = vand.u32 %v146, 4294901760
  %2852 = vmatpush.msra.mxu0 %v2851
  %v2853 = vand.u32 %v145, 4294901760
  %2854 = vmatpush.msra.mxu0 %v2853
  %v2855 = vand.u32 %v144, 4294901760
  %2856 = vmatpush.msra.mxu0 %v2855
  %v2857 = vand.u32 %v143, 4294901760
  %2858 = vmatpush.msra.mxu0 %v2857
  %v2859 = vand.u32 %v142, 4294901760
  %2860 = vmatpush.msra.mxu0 %v2859
  %v2861 = vand.u32 %v141, 4294901760
  %2862 = vmatpush.msra.mxu0 %v2861
  %v2863 = vand.u32 %v140, 4294901760
  %2864 = vmatpush.msra.mxu0 %v2863
  %v2865 = vand.u32 %v139, 4294901760
  %2866 = vmatpush.msra.mxu0 %v2865
  %v2867 = vand.u32 %v138, 4294901760
  %2868 = vmatpush.msra.mxu0 %v2867
  %v2869 = vand.u32 %v137, 4294901760
  %2870 = vmatpush.msra.mxu0 %v2869
  %v2871 = vand.u32 %v136, 4294901760
  %2872 = vmatpush.msra.mxu0 %v2871
  %v2873 = vand.u32 %v135, 4294901760
  %2874 = vmatpush.msra.mxu0 %v2873
  %v2875 = vand.u32 %v134, 4294901760
  %2876 = vmatpush.msra.mxu0 %v2875
  %v2877 = vand.u32 %v21, 4294901760
  %2878 = vmatmul.f32.gmra.mxu0 %v2877
  %v2879 = vpop.f32.mrf.mxu0
  %v2880 = vadd.f32 %v2843, %v2879
  %2881 = vdwg.mxu0
  %v2882 = vmin.f32 %v2880, 20.0
  %v2883 = vmul.f32 %v2882, 1.442695
  %v2884 = vpow.pop %v2883
  %v2885 = vadd.f32 %v2884, 1.0
  %v2886 = vlog2.pop %v2885
  %v2887 = vmul.f32 %v2886, 0.6931472
  %v2888 = vmul.f32 -0.5, %v2884
  %v2889 = vadd.f32 %v2888, 1.0
  %v2890 = vmul.f32 %v2889, %v2884
  %v2891 = vand.u32 2147483647, %v2884
  %vm2892 = vcmp.lt.f32.partialorder %v2891, 0.0004427343
  %v2893 = vsel %vm2892, %v2890, %v2887
  %vm2894 = vcmp.gt.f32.partialorder %v2880, 20.0
  %v2895 = vsel %vm2894, %v2880, %v2893
  %2896 = vst [vmem:[%s3] sm:$0xff] %v2895
  // Predicated region
  $region14: #{factorized_forward.1} parent=0 // pred_check
    _
  $region15: #{factorized_forward.1} parent=0 // pred_check_branch
    %2898 = sbr.rel (0) target = $region17
  $region16: #{factorized_forward.1} parent=0 // pred_region
    _
  $region17: #{factorized_forward.1} parent=0 // pred_fallthru
    _
  // Predicated region
  $region18: #{factorized_forward.1} parent=0 // pred_check
    _
  $region19: #{factorized_forward.1} parent=0 // pred_check_branch
    %2900 = sbr.rel (0) target = $region21
  $region20: #{factorized_forward.1} parent=0 // pred_region
    _
  $region21: #{factorized_forward.1} parent=0 // pred_fallthru
    _

</llo_original>
